<compile_context>
chip_gen: v7x
topology: tpu7x:2x2x1
jax: 0.10.0
libtpu: 0.0.40
codegen_flags: <defaults>
</compile_context>

<pallas_src>
import functools

import jax
import jax.numpy as jnp
from jax.experimental import pallas as pl
from jax.experimental.pallas import tpu as pltpu

NUM_HIDDEN = 16  # matches `num_hidden` in the torch module


def _leaky_relu(x, slope=0.1):
    return jnp.where(x >= 0, x, slope * x)


def covid_pred_kernel(
    city_ref, seq2d_ref,
    w01_ref, b01_ref, w02_ref, b02_ref,
    wih0_ref, bih0_aug_ref, whh0_ref, bhh0_n_ref,
    w1f_ref, b1f_ref,
    wcat_ref, bout_ref,
    out_ref,
    *, B, T,
):
    H = NUM_HIDDEN
    city = city_ref[...]                                     # (B, F_city) f32

    # ---- fc0_1 + leaky_relu(0.1) ----
    h = jnp.dot(city, w01_ref[...], preferred_element_type=jnp.float32) + b01_ref[...]
    h = _leaky_relu(h)
    # ---- fc0_2 + leaky_relu(0.1) ----
    h = jnp.dot(h, w02_ref[...], preferred_element_type=jnp.float32) + b02_ref[...]
    h = _leaky_relu(h)                                       # (B, 2H)

    # view(B, 2, H).permute(1,0,2): layer-0 init = h[:, :H], layer-1 init = h[:, H:]
    h0 = h[:, :H]
    h1 = h[:, H:2 * H]

    # ---- hoisted layer-0 input projection: single matmul for all timesteps ----
    # bih0_aug already contains bih0 + bhh0 for the r/z gates (n bias kept apart).
    gi0_all = (jnp.dot(seq2d_ref[...], wih0_ref[...],
                       preferred_element_type=jnp.float32)
               + bih0_aug_ref[...])                          # (B*T, 3H)
    gi0_all = gi0_all.reshape(B, T, 3 * H)                   # lane dim unchanged -> cheap

    whh0 = whh0_ref[...]                                     # (H, 3H)
    bhh0_n = bhh0_n_ref[...]                                 # (1, H)
    w1f = w1f_ref[...]                                       # (2H, 4H) fused layer-1 weight
    b1f = b1f_ref[...]                                       # (1, 4H)  fused layer-1 bias

    # ---- fully unrolled recurrence (T static): 2 MXU pushes per timestep ----
    for t in range(T):
        # layer 0: only the recurrent matmul remains inside the loop
        gi0 = gi0_all[:, t, :]                               # (B, 3H) static slice
        gh0 = jnp.dot(h0, whh0, preferred_element_type=jnp.float32)      # (B, 3H)
        r0 = jax.nn.sigmoid(gi0[:, 0 * H:1 * H] + gh0[:, 0 * H:1 * H])
        z0 = jax.nn.sigmoid(gi0[:, 1 * H:2 * H] + gh0[:, 1 * H:2 * H])
        n0 = jnp.tanh(gi0[:, 2 * H:3 * H] + r0 * (gh0[:, 2 * H:3 * H] + bhh0_n))
        h0 = (1.0 - z0) * n0 + z0 * h0

        # layer 1: single fused matmul over [h0_new, h1_prev]
        #   columns [0,2H)   -> r/z pre-activations (input + hidden summed)
        #   columns [2H,3H)  -> n-gate input part   (x @ Wn_ih + bih_n)
        #   columns [3H,4H)  -> n-gate hidden part  (h @ Wn_hh + bhh_n), r-scaled below
        xh = jnp.concatenate([h0, h1], axis=1)               # (B, 2H)
        pre = jnp.dot(xh, w1f, preferred_element_type=jnp.float32) + b1f  # (B, 4H)
        r1 = jax.nn.sigmoid(pre[:, 0 * H:1 * H])
        z1 = jax.nn.sigmoid(pre[:, 1 * H:2 * H])
        n1 = jnp.tanh(pre[:, 2 * H:3 * H] + r1 * pre[:, 3 * H:4 * H])
        h1 = (1.0 - z1) * n1 + z1 * h1

    # ---- fc_1(cat([h_last_layer, cityData], dim=1)) as ONE matmul ----
    hc = jnp.concatenate([h1, city], axis=1)                 # (B, H + F_city)
    out = jnp.dot(hc, wcat_ref[...], preferred_element_type=jnp.float32) + bout_ref[...]
    out_ref[...] = out.astype(out_ref.dtype)


def covid_pred_forward(cityData, caseSeries, params):
    """cityData: (B, F_city), caseSeries: (B, T, F_seq) -> (B, F_seq)."""
    B, F_city = cityData.shape
    _, T, F_seq = caseSeries.shape
    H = NUM_HIDDEN

    # Batch-first stays batch-first: no transpose, just merge leading dims (free).
    seq2d = caseSeries.reshape(B * T, F_seq)                 # (B*T, F_seq)

    # ---- one-time weight packing / fusion (tiny, done at JAX level) ----
    # layer 0: fold bih0 + bhh0 for the r/z gates into the hoisted projection bias
    bih0_aug = params["bih0"].at[:, :2 * H].add(params["bhh0"][:, :2 * H])
    bhh0_n = params["bhh0"][:, 2 * H:3 * H]                  # (1, H)

    # layer 1: fused (2H, 4H) weight  [[Wih_rz, Wih_n, 0], [Whh_rz, 0, Whh_n]]
    wih1, whh1 = params["wih1"], params["whh1"]
    zeros_h = jnp.zeros((H, H), jnp.float32)
    w1f = jnp.concatenate([
        jnp.concatenate([wih1[:, :2 * H], wih1[:, 2 * H:3 * H], zeros_h], axis=1),
        jnp.concatenate([whh1[:, :2 * H], zeros_h, whh1[:, 2 * H:3 * H]], axis=1),
    ], axis=0)                                               # (2H, 4H)
    b1f = jnp.concatenate([
        params["bih1"][:, :2 * H] + params["bhh1"][:, :2 * H],
        params["bih1"][:, 2 * H:3 * H],
        params["bhh1"][:, 2 * H:3 * H],
    ], axis=1)                                               # (1, 4H)

    # final fc_1: single (H + F_city, F_seq) weight
    wcat = jnp.concatenate([params["w1h"], params["w1c"]], axis=0)

    args = (
        cityData, seq2d,
        params["w01"], params["b01"], params["w02"], params["b02"],
        params["wih0"], bih0_aug, params["whh0"], bhh0_n,
        w1f, b1f,
        wcat, params["b1"],
    )
    vmem_spec = pl.BlockSpec(memory_space=pltpu.MemorySpace.VMEM)
    kernel = functools.partial(covid_pred_kernel, B=B, T=T)
    return pl.pallas_call(
        kernel,
        out_shape=jax.ShapeDtypeStruct((B, F_seq), jnp.float32),
        in_specs=[vmem_spec] * len(args),
        out_specs=vmem_spec,
    )(*args)


def init_params(key, cityData_features, seq_features):
    H = NUM_HIDDEN
    ks = jax.random.split(key, 16)

    def w(k, shape, scale=0.1):
        return (scale * jax.random.normal(k, shape)).astype(jnp.float32)

    return {
        # fc0_1: F_city -> 4H ; fc0_2: 4H -> 2H   (stored (in, out))
        "w01": w(ks[0], (cityData_features, 4 * H)),
        "b01": w(ks[1], (1, 4 * H)),
        "w02": w(ks[2], (4 * H, 2 * H)),
        "b02": w(ks[3], (1, 2 * H)),
        # GRU layer 0: input F_seq -> hidden H   (gates packed [r, z, n] along out dim)
        "wih0": w(ks[4], (seq_features, 3 * H)),
        "whh0": w(ks[5], (H, 3 * H)),
        "bih0": w(ks[6], (1, 3 * H)),
        "bhh0": w(ks[7], (1, 3 * H)),
        # GRU layer 1: input H -> hidden H
        "wih1": w(ks[8], (H, 3 * H)),
        "whh1": w(ks[9], (H, 3 * H)),
        "bih1": w(ks[10], (1, 3 * H)),
        "bhh1": w(ks[11], (1, 3 * H)),
        # fc_1: (H + F_city) -> F_seq, split into the h part and the cityData part
        "w1h": w(ks[12], (H, seq_features)),
        "w1c": w(ks[13], (cityData_features, seq_features)),
        "b1": w(ks[14], (1, seq_features)),
    }


if __name__ == "__main__":
    B, T = 2, 8
    cityData_features, seq_features = 12, 8

    key = jax.random.PRNGKey(0)
    k_city, k_seq, k_params = jax.random.split(key, 3)

    cityData = jax.random.normal(k_city, (B, cityData_features), dtype=jnp.float32)
    caseSeries = jax.random.normal(k_seq, (B, T, seq_features), dtype=jnp.float32)
    params = init_params(k_params, cityData_features, seq_features)

    out = covid_pred_forward(cityData, caseSeries, params)
    out = jax.block_until_ready(out)
    assert out.shape == (B, seq_features)
    print("KERNEL_OK")
</pallas_src>

<mosaic_0001>
module attributes {stable_mosaic.version = 11 : i64} {
  func.func @covid_pred_kernel(%arg0: memref<2x12xf32, #tpu.memory_space<vmem>>, %arg1: memref<16x8xf32, #tpu.memory_space<vmem>>, %arg2: memref<12x64xf32, #tpu.memory_space<vmem>>, %arg3: memref<1x64xf32, #tpu.memory_space<vmem>>, %arg4: memref<64x32xf32, #tpu.memory_space<vmem>>, %arg5: memref<1x32xf32, #tpu.memory_space<vmem>>, %arg6: memref<8x48xf32, #tpu.memory_space<vmem>>, %arg7: memref<1x48xf32, #tpu.memory_space<vmem>>, %arg8: memref<16x48xf32, #tpu.memory_space<vmem>>, %arg9: memref<1x16xf32, #tpu.memory_space<vmem>>, %arg10: memref<32x64xf32, #tpu.memory_space<vmem>>, %arg11: memref<1x64xf32, #tpu.memory_space<vmem>>, %arg12: memref<28x8xf32, #tpu.memory_space<vmem>>, %arg13: memref<1x8xf32, #tpu.memory_space<vmem>>, %arg14: memref<2x8xf32, #tpu.memory_space<vmem>>) attributes {dimension_semantics = [], scalar_prefetch = 0 : i64, scratch_operands = 0 : i64, tpu.core_type = #tpu.core_type<tc>} {
    %c0 = arith.constant 0 : index
    %c0_0 = arith.constant 0 : index
    %0 = vector.load %arg0[%c0, %c0_0] : memref<2x12xf32, #tpu.memory_space<vmem>>, vector<2x12xf32>
    %c0_1 = arith.constant 0 : index
    %c0_2 = arith.constant 0 : index
    %1 = vector.load %arg2[%c0_1, %c0_2] : memref<12x64xf32, #tpu.memory_space<vmem>>, vector<12x64xf32>
    %cst = arith.constant dense<0.000000e+00> : vector<2x64xf32>
    %2 = tpu.matmul %0, %1, %cst {dimension_numbers = #tpu.dot_dimension_numbers<[1], [0], [0], [1], [0, 0, 1, 1], [], []>} : vector<2x12xf32>, vector<12x64xf32>, vector<2x64xf32> -> vector<2x64xf32>
    %c0_3 = arith.constant 0 : index
    %c0_4 = arith.constant 0 : index
    %3 = vector.load %arg3[%c0_3, %c0_4] : memref<1x64xf32, #tpu.memory_space<vmem>>, vector<1x64xf32>
    %4 = vector.broadcast %3 : vector<1x64xf32> to vector<2x64xf32>
    %5 = arith.addf %2, %4 : vector<2x64xf32>
    %cst_5 = arith.constant 0.000000e+00 : f32
    %6 = vector.broadcast %cst_5 : f32 to vector<2x64xf32>
    %7 = arith.cmpf oge, %5, %6 : vector<2x64xf32>
    %cst_6 = arith.constant 1.000000e-01 : f32
    %8 = vector.broadcast %cst_6 : f32 to vector<2x64xf32>
    %9 = arith.mulf %8, %5 : vector<2x64xf32>
    %10 = arith.select %7, %5, %9 : vector<2x64xi1>, vector<2x64xf32>
    %c0_7 = arith.constant 0 : index
    %c0_8 = arith.constant 0 : index
    %11 = vector.load %arg4[%c0_7, %c0_8] : memref<64x32xf32, #tpu.memory_space<vmem>>, vector<64x32xf32>
    %cst_9 = arith.constant dense<0.000000e+00> : vector<2x32xf32>
    %12 = tpu.matmul %10, %11, %cst_9 {dimension_numbers = #tpu.dot_dimension_numbers<[1], [0], [0], [1], [0, 0, 1, 1], [], []>} : vector<2x64xf32>, vector<64x32xf32>, vector<2x32xf32> -> vector<2x32xf32>
    %c0_10 = arith.constant 0 : index
    %c0_11 = arith.constant 0 : index
    %13 = vector.load %arg5[%c0_10, %c0_11] : memref<1x32xf32, #tpu.memory_space<vmem>>, vector<1x32xf32>
    %14 = vector.broadcast %13 : vector<1x32xf32> to vector<2x32xf32>
    %15 = arith.addf %12, %14 : vector<2x32xf32>
    %cst_12 = arith.constant 0.000000e+00 : f32
    %16 = vector.broadcast %cst_12 : f32 to vector<2x32xf32>
    %17 = arith.cmpf oge, %15, %16 : vector<2x32xf32>
    %cst_13 = arith.constant 1.000000e-01 : f32
    %18 = vector.broadcast %cst_13 : f32 to vector<2x32xf32>
    %19 = arith.mulf %18, %15 : vector<2x32xf32>
    %20 = arith.select %17, %15, %19 : vector<2x32xi1>, vector<2x32xf32>
    %21 = vector.extract_strided_slice %20 {offsets = [0, 0], sizes = [2, 16], strides = [1, 1]} : vector<2x32xf32> to vector<2x16xf32>
    %22 = vector.extract_strided_slice %20 {offsets = [0, 16], sizes = [2, 16], strides = [1, 1]} : vector<2x32xf32> to vector<2x16xf32>
    %c0_14 = arith.constant 0 : index
    %c0_15 = arith.constant 0 : index
    %23 = vector.load %arg1[%c0_14, %c0_15] : memref<16x8xf32, #tpu.memory_space<vmem>>, vector<16x8xf32>
    %c0_16 = arith.constant 0 : index
    %c0_17 = arith.constant 0 : index
    %24 = vector.load %arg6[%c0_16, %c0_17] : memref<8x48xf32, #tpu.memory_space<vmem>>, vector<8x48xf32>
    %cst_18 = arith.constant dense<0.000000e+00> : vector<16x48xf32>
    %25 = tpu.matmul %23, %24, %cst_18 {dimension_numbers = #tpu.dot_dimension_numbers<[1], [0], [0], [1], [0, 0, 1, 1], [], []>} : vector<16x8xf32>, vector<8x48xf32>, vector<16x48xf32> -> vector<16x48xf32>
    %c0_19 = arith.constant 0 : index
    %c0_20 = arith.constant 0 : index
    %26 = vector.load %arg7[%c0_19, %c0_20] : memref<1x48xf32, #tpu.memory_space<vmem>>, vector<1x48xf32>
    %27 = vector.broadcast %26 : vector<1x48xf32> to vector<16x48xf32>
    %28 = arith.addf %25, %27 : vector<16x48xf32>
    %29 = vector.shape_cast %28 : vector<16x48xf32> to vector<2x8x48xf32>
    %c0_21 = arith.constant 0 : index
    %c0_22 = arith.constant 0 : index
    %30 = vector.load %arg8[%c0_21, %c0_22] : memref<16x48xf32, #tpu.memory_space<vmem>>, vector<16x48xf32>
    %c0_23 = arith.constant 0 : index
    %c0_24 = arith.constant 0 : index
    %31 = vector.load %arg9[%c0_23, %c0_24] : memref<1x16xf32, #tpu.memory_space<vmem>>, vector<1x16xf32>
    %c0_25 = arith.constant 0 : index
    %c0_26 = arith.constant 0 : index
    %32 = vector.load %arg10[%c0_25, %c0_26] : memref<32x64xf32, #tpu.memory_space<vmem>>, vector<32x64xf32>
    %c0_27 = arith.constant 0 : index
    %c0_28 = arith.constant 0 : index
    %33 = vector.load %arg11[%c0_27, %c0_28] : memref<1x64xf32, #tpu.memory_space<vmem>>, vector<1x64xf32>
    %34 = vector.extract_strided_slice %29 {offsets = [0, 0, 0], sizes = [2, 1, 48], strides = [1, 1, 1]} : vector<2x8x48xf32> to vector<2x1x48xf32>
    %35 = vector.shape_cast %34 : vector<2x1x48xf32> to vector<2x48xf32>
    %cst_29 = arith.constant dense<0.000000e+00> : vector<2x48xf32>
    %36 = tpu.matmul %21, %30, %cst_29 {dimension_numbers = #tpu.dot_dimension_numbers<[1], [0], [0], [1], [0, 0, 1, 1], [], []>} : vector<2x16xf32>, vector<16x48xf32>, vector<2x48xf32> -> vector<2x48xf32>
    %37 = vector.extract_strided_slice %35 {offsets = [0, 0], sizes = [2, 16], strides = [1, 1]} : vector<2x48xf32> to vector<2x16xf32>
    %38 = vector.extract_strided_slice %36 {offsets = [0, 0], sizes = [2, 16], strides = [1, 1]} : vector<2x48xf32> to vector<2x16xf32>
    %39 = arith.addf %37, %38 : vector<2x16xf32>
    %40 = arith.negf %39 : vector<2x16xf32>
    %41 = math.exp %40 : vector<2x16xf32>
    %cst_30 = arith.constant 1.000000e+00 : f32
    %42 = vector.broadcast %cst_30 : f32 to vector<2x16xf32>
    %43 = arith.addf %42, %41 : vector<2x16xf32>
    %44 = arith.divf %42, %43 : vector<2x16xf32>
    %45 = vector.extract_strided_slice %35 {offsets = [0, 16], sizes = [2, 16], strides = [1, 1]} : vector<2x48xf32> to vector<2x16xf32>
    %46 = vector.extract_strided_slice %36 {offsets = [0, 16], sizes = [2, 16], strides = [1, 1]} : vector<2x48xf32> to vector<2x16xf32>
    %47 = arith.addf %45, %46 : vector<2x16xf32>
    %48 = arith.negf %47 : vector<2x16xf32>
    %49 = math.exp %48 : vector<2x16xf32>
    %cst_31 = arith.constant 1.000000e+00 : f32
    %50 = vector.broadcast %cst_31 : f32 to vector<2x16xf32>
    %51 = arith.addf %50, %49 : vector<2x16xf32>
    %52 = arith.divf %50, %51 : vector<2x16xf32>
    %53 = vector.extract_strided_slice %35 {offsets = [0, 32], sizes = [2, 16], strides = [1, 1]} : vector<2x48xf32> to vector<2x16xf32>
    %54 = vector.extract_strided_slice %36 {offsets = [0, 32], sizes = [2, 16], strides = [1, 1]} : vector<2x48xf32> to vector<2x16xf32>
    %55 = vector.broadcast %31 : vector<1x16xf32> to vector<2x16xf32>
    %56 = arith.addf %54, %55 : vector<2x16xf32>
    %57 = arith.mulf %44, %56 : vector<2x16xf32>
    %58 = arith.addf %53, %57 : vector<2x16xf32>
    %59 = math.tanh %58 : vector<2x16xf32>
    %cst_32 = arith.constant 1.000000e+00 : f32
    %60 = vector.broadcast %cst_32 : f32 to vector<2x16xf32>
    %61 = arith.subf %60, %52 : vector<2x16xf32>
    %62 = arith.mulf %61, %59 : vector<2x16xf32>
    %63 = arith.mulf %52, %21 : vector<2x16xf32>
    %64 = arith.addf %62, %63 : vector<2x16xf32>
    %65 = tpu.concatenate %64, %22 in 1 : vector<2x16xf32>, vector<2x16xf32> -> vector<2x32xf32>
    %cst_33 = arith.constant dense<0.000000e+00> : vector<2x64xf32>
    %66 = tpu.matmul %65, %32, %cst_33 {dimension_numbers = #tpu.dot_dimension_numbers<[1], [0], [0], [1], [0, 0, 1, 1], [], []>} : vector<2x32xf32>, vector<32x64xf32>, vector<2x64xf32> -> vector<2x64xf32>
    %67 = vector.broadcast %33 : vector<1x64xf32> to vector<2x64xf32>
    %68 = arith.addf %66, %67 : vector<2x64xf32>
    %69 = vector.extract_strided_slice %68 {offsets = [0, 0], sizes = [2, 16], strides = [1, 1]} : vector<2x64xf32> to vector<2x16xf32>
    %70 = arith.negf %69 : vector<2x16xf32>
    %71 = math.exp %70 : vector<2x16xf32>
    %cst_34 = arith.constant 1.000000e+00 : f32
    %72 = vector.broadcast %cst_34 : f32 to vector<2x16xf32>
    %73 = arith.addf %72, %71 : vector<2x16xf32>
    %74 = arith.divf %72, %73 : vector<2x16xf32>
    %75 = vector.extract_strided_slice %68 {offsets = [0, 16], sizes = [2, 16], strides = [1, 1]} : vector<2x64xf32> to vector<2x16xf32>
    %76 = arith.negf %75 : vector<2x16xf32>
    %77 = math.exp %76 : vector<2x16xf32>
    %cst_35 = arith.constant 1.000000e+00 : f32
    %78 = vector.broadcast %cst_35 : f32 to vector<2x16xf32>
    %79 = arith.addf %78, %77 : vector<2x16xf32>
    %80 = arith.divf %78, %79 : vector<2x16xf32>
    %81 = vector.extract_strided_slice %68 {offsets = [0, 32], sizes = [2, 16], strides = [1, 1]} : vector<2x64xf32> to vector<2x16xf32>
    %82 = vector.extract_strided_slice %68 {offsets = [0, 48], sizes = [2, 16], strides = [1, 1]} : vector<2x64xf32> to vector<2x16xf32>
    %83 = arith.mulf %74, %82 : vector<2x16xf32>
    %84 = arith.addf %81, %83 : vector<2x16xf32>
    %85 = math.tanh %84 : vector<2x16xf32>
    %cst_36 = arith.constant 1.000000e+00 : f32
    %86 = vector.broadcast %cst_36 : f32 to vector<2x16xf32>
    %87 = arith.subf %86, %80 : vector<2x16xf32>
    %88 = arith.mulf %87, %85 : vector<2x16xf32>
    %89 = arith.mulf %80, %22 : vector<2x16xf32>
    %90 = arith.addf %88, %89 : vector<2x16xf32>
    %91 = vector.extract_strided_slice %29 {offsets = [0, 1, 0], sizes = [2, 1, 48], strides = [1, 1, 1]} : vector<2x8x48xf32> to vector<2x1x48xf32>
    %92 = vector.shape_cast %91 : vector<2x1x48xf32> to vector<2x48xf32>
    %cst_37 = arith.constant dense<0.000000e+00> : vector<2x48xf32>
    %93 = tpu.matmul %64, %30, %cst_37 {dimension_numbers = #tpu.dot_dimension_numbers<[1], [0], [0], [1], [0, 0, 1, 1], [], []>} : vector<2x16xf32>, vector<16x48xf32>, vector<2x48xf32> -> vector<2x48xf32>
    %94 = vector.extract_strided_slice %92 {offsets = [0, 0], sizes = [2, 16], strides = [1, 1]} : vector<2x48xf32> to vector<2x16xf32>
    %95 = vector.extract_strided_slice %93 {offsets = [0, 0], sizes = [2, 16], strides = [1, 1]} : vector<2x48xf32> to vector<2x16xf32>
    %96 = arith.addf %94, %95 : vector<2x16xf32>
    %97 = arith.negf %96 : vector<2x16xf32>
    %98 = math.exp %97 : vector<2x16xf32>
    %cst_38 = arith.constant 1.000000e+00 : f32
    %99 = vector.broadcast %cst_38 : f32 to vector<2x16xf32>
    %100 = arith.addf %99, %98 : vector<2x16xf32>
    %101 = arith.divf %99, %100 : vector<2x16xf32>
    %102 = vector.extract_strided_slice %92 {offsets = [0, 16], sizes = [2, 16], strides = [1, 1]} : vector<2x48xf32> to vector<2x16xf32>
    %103 = vector.extract_strided_slice %93 {offsets = [0, 16], sizes = [2, 16], strides = [1, 1]} : vector<2x48xf32> to vector<2x16xf32>
    %104 = arith.addf %102, %103 : vector<2x16xf32>
    %105 = arith.negf %104 : vector<2x16xf32>
    %106 = math.exp %105 : vector<2x16xf32>
    %cst_39 = arith.constant 1.000000e+00 : f32
    %107 = vector.broadcast %cst_39 : f32 to vector<2x16xf32>
    %108 = arith.addf %107, %106 : vector<2x16xf32>
    %109 = arith.divf %107, %108 : vector<2x16xf32>
    %110 = vector.extract_strided_slice %92 {offsets = [0, 32], sizes = [2, 16], strides = [1, 1]} : vector<2x48xf32> to vector<2x16xf32>
    %111 = vector.extract_strided_slice %93 {offsets = [0, 32], sizes = [2, 16], strides = [1, 1]} : vector<2x48xf32> to vector<2x16xf32>
    %112 = vector.broadcast %31 : vector<1x16xf32> to vector<2x16xf32>
    %113 = arith.addf %111, %112 : vector<2x16xf32>
    %114 = arith.mulf %101, %113 : vector<2x16xf32>
    %115 = arith.addf %110, %114 : vector<2x16xf32>
    %116 = math.tanh %115 : vector<2x16xf32>
    %cst_40 = arith.constant 1.000000e+00 : f32
    %117 = vector.broadcast %cst_40 : f32 to vector<2x16xf32>
    %118 = arith.subf %117, %109 : vector<2x16xf32>
    %119 = arith.mulf %118, %116 : vector<2x16xf32>
    %120 = arith.mulf %109, %64 : vector<2x16xf32>
    %121 = arith.addf %119, %120 : vector<2x16xf32>
    %122 = tpu.concatenate %121, %90 in 1 : vector<2x16xf32>, vector<2x16xf32> -> vector<2x32xf32>
    %cst_41 = arith.constant dense<0.000000e+00> : vector<2x64xf32>
    %123 = tpu.matmul %122, %32, %cst_41 {dimension_numbers = #tpu.dot_dimension_numbers<[1], [0], [0], [1], [0, 0, 1, 1], [], []>} : vector<2x32xf32>, vector<32x64xf32>, vector<2x64xf32> -> vector<2x64xf32>
    %124 = vector.broadcast %33 : vector<1x64xf32> to vector<2x64xf32>
    %125 = arith.addf %123, %124 : vector<2x64xf32>
    %126 = vector.extract_strided_slice %125 {offsets = [0, 0], sizes = [2, 16], strides = [1, 1]} : vector<2x64xf32> to vector<2x16xf32>
    %127 = arith.negf %126 : vector<2x16xf32>
    %128 = math.exp %127 : vector<2x16xf32>
    %cst_42 = arith.constant 1.000000e+00 : f32
    %129 = vector.broadcast %cst_42 : f32 to vector<2x16xf32>
    %130 = arith.addf %129, %128 : vector<2x16xf32>
    %131 = arith.divf %129, %130 : vector<2x16xf32>
    %132 = vector.extract_strided_slice %125 {offsets = [0, 16], sizes = [2, 16], strides = [1, 1]} : vector<2x64xf32> to vector<2x16xf32>
    %133 = arith.negf %132 : vector<2x16xf32>
    %134 = math.exp %133 : vector<2x16xf32>
    %cst_43 = arith.constant 1.000000e+00 : f32
    %135 = vector.broadcast %cst_43 : f32 to vector<2x16xf32>
    %136 = arith.addf %135, %134 : vector<2x16xf32>
    %137 = arith.divf %135, %136 : vector<2x16xf32>
    %138 = vector.extract_strided_slice %125 {offsets = [0, 32], sizes = [2, 16], strides = [1, 1]} : vector<2x64xf32> to vector<2x16xf32>
    %139 = vector.extract_strided_slice %125 {offsets = [0, 48], sizes = [2, 16], strides = [1, 1]} : vector<2x64xf32> to vector<2x16xf32>
    %140 = arith.mulf %131, %139 : vector<2x16xf32>
    %141 = arith.addf %138, %140 : vector<2x16xf32>
    %142 = math.tanh %141 : vector<2x16xf32>
    %cst_44 = arith.constant 1.000000e+00 : f32
    %143 = vector.broadcast %cst_44 : f32 to vector<2x16xf32>
    %144 = arith.subf %143, %137 : vector<2x16xf32>
    %145 = arith.mulf %144, %142 : vector<2x16xf32>
    %146 = arith.mulf %137, %90 : vector<2x16xf32>
    %147 = arith.addf %145, %146 : vector<2x16xf32>
    %148 = vector.extract_strided_slice %29 {offsets = [0, 2, 0], sizes = [2, 1, 48], strides = [1, 1, 1]} : vector<2x8x48xf32> to vector<2x1x48xf32>
    %149 = vector.shape_cast %148 : vector<2x1x48xf32> to vector<2x48xf32>
    %cst_45 = arith.constant dense<0.000000e+00> : vector<2x48xf32>
    %150 = tpu.matmul %121, %30, %cst_45 {dimension_numbers = #tpu.dot_dimension_numbers<[1], [0], [0], [1], [0, 0, 1, 1], [], []>} : vector<2x16xf32>, vector<16x48xf32>, vector<2x48xf32> -> vector<2x48xf32>
    %151 = vector.extract_strided_slice %149 {offsets = [0, 0], sizes = [2, 16], strides = [1, 1]} : vector<2x48xf32> to vector<2x16xf32>
    %152 = vector.extract_strided_slice %150 {offsets = [0, 0], sizes = [2, 16], strides = [1, 1]} : vector<2x48xf32> to vector<2x16xf32>
    %153 = arith.addf %151, %152 : vector<2x16xf32>
    %154 = arith.negf %153 : vector<2x16xf32>
    %155 = math.exp %154 : vector<2x16xf32>
    %cst_46 = arith.constant 1.000000e+00 : f32
    %156 = vector.broadcast %cst_46 : f32 to vector<2x16xf32>
    %157 = arith.addf %156, %155 : vector<2x16xf32>
    %158 = arith.divf %156, %157 : vector<2x16xf32>
    %159 = vector.extract_strided_slice %149 {offsets = [0, 16], sizes = [2, 16], strides = [1, 1]} : vector<2x48xf32> to vector<2x16xf32>
    %160 = vector.extract_strided_slice %150 {offsets = [0, 16], sizes = [2, 16], strides = [1, 1]} : vector<2x48xf32> to vector<2x16xf32>
    %161 = arith.addf %159, %160 : vector<2x16xf32>
    %162 = arith.negf %161 : vector<2x16xf32>
    %163 = math.exp %162 : vector<2x16xf32>
    %cst_47 = arith.constant 1.000000e+00 : f32
    %164 = vector.broadcast %cst_47 : f32 to vector<2x16xf32>
    %165 = arith.addf %164, %163 : vector<2x16xf32>
    %166 = arith.divf %164, %165 : vector<2x16xf32>
    %167 = vector.extract_strided_slice %149 {offsets = [0, 32], sizes = [2, 16], strides = [1, 1]} : vector<2x48xf32> to vector<2x16xf32>
    %168 = vector.extract_strided_slice %150 {offsets = [0, 32], sizes = [2, 16], strides = [1, 1]} : vector<2x48xf32> to vector<2x16xf32>
    %169 = vector.broadcast %31 : vector<1x16xf32> to vector<2x16xf32>
    %170 = arith.addf %168, %169 : vector<2x16xf32>
    %171 = arith.mulf %158, %170 : vector<2x16xf32>
    %172 = arith.addf %167, %171 : vector<2x16xf32>
    %173 = math.tanh %172 : vector<2x16xf32>
    %cst_48 = arith.constant 1.000000e+00 : f32
    %174 = vector.broadcast %cst_48 : f32 to vector<2x16xf32>
    %175 = arith.subf %174, %166 : vector<2x16xf32>
    %176 = arith.mulf %175, %173 : vector<2x16xf32>
    %177 = arith.mulf %166, %121 : vector<2x16xf32>
    %178 = arith.addf %176, %177 : vector<2x16xf32>
    %179 = tpu.concatenate %178, %147 in 1 : vector<2x16xf32>, vector<2x16xf32> -> vector<2x32xf32>
    %cst_49 = arith.constant dense<0.000000e+00> : vector<2x64xf32>
    %180 = tpu.matmul %179, %32, %cst_49 {dimension_numbers = #tpu.dot_dimension_numbers<[1], [0], [0], [1], [0, 0, 1, 1], [], []>} : vector<2x32xf32>, vector<32x64xf32>, vector<2x64xf32> -> vector<2x64xf32>
    %181 = vector.broadcast %33 : vector<1x64xf32> to vector<2x64xf32>
    %182 = arith.addf %180, %181 : vector<2x64xf32>
    %183 = vector.extract_strided_slice %182 {offsets = [0, 0], sizes = [2, 16], strides = [1, 1]} : vector<2x64xf32> to vector<2x16xf32>
    %184 = arith.negf %183 : vector<2x16xf32>
    %185 = math.exp %184 : vector<2x16xf32>
    %cst_50 = arith.constant 1.000000e+00 : f32
    %186 = vector.broadcast %cst_50 : f32 to vector<2x16xf32>
    %187 = arith.addf %186, %185 : vector<2x16xf32>
    %188 = arith.divf %186, %187 : vector<2x16xf32>
    %189 = vector.extract_strided_slice %182 {offsets = [0, 16], sizes = [2, 16], strides = [1, 1]} : vector<2x64xf32> to vector<2x16xf32>
    %190 = arith.negf %189 : vector<2x16xf32>
    %191 = math.exp %190 : vector<2x16xf32>
    %cst_51 = arith.constant 1.000000e+00 : f32
    %192 = vector.broadcast %cst_51 : f32 to vector<2x16xf32>
    %193 = arith.addf %192, %191 : vector<2x16xf32>
    %194 = arith.divf %192, %193 : vector<2x16xf32>
    %195 = vector.extract_strided_slice %182 {offsets = [0, 32], sizes = [2, 16], strides = [1, 1]} : vector<2x64xf32> to vector<2x16xf32>
    %196 = vector.extract_strided_slice %182 {offsets = [0, 48], sizes = [2, 16], strides = [1, 1]} : vector<2x64xf32> to vector<2x16xf32>
    %197 = arith.mulf %188, %196 : vector<2x16xf32>
    %198 = arith.addf %195, %197 : vector<2x16xf32>
    %199 = math.tanh %198 : vector<2x16xf32>
    %cst_52 = arith.constant 1.000000e+00 : f32
    %200 = vector.broadcast %cst_52 : f32 to vector<2x16xf32>
    %201 = arith.subf %200, %194 : vector<2x16xf32>
    %202 = arith.mulf %201, %199 : vector<2x16xf32>
    %203 = arith.mulf %194, %147 : vector<2x16xf32>
    %204 = arith.addf %202, %203 : vector<2x16xf32>
    %205 = vector.extract_strided_slice %29 {offsets = [0, 3, 0], sizes = [2, 1, 48], strides = [1, 1, 1]} : vector<2x8x48xf32> to vector<2x1x48xf32>
    %206 = vector.shape_cast %205 : vector<2x1x48xf32> to vector<2x48xf32>
    %cst_53 = arith.constant dense<0.000000e+00> : vector<2x48xf32>
    %207 = tpu.matmul %178, %30, %cst_53 {dimension_numbers = #tpu.dot_dimension_numbers<[1], [0], [0], [1], [0, 0, 1, 1], [], []>} : vector<2x16xf32>, vector<16x48xf32>, vector<2x48xf32> -> vector<2x48xf32>
    %208 = vector.extract_strided_slice %206 {offsets = [0, 0], sizes = [2, 16], strides = [1, 1]} : vector<2x48xf32> to vector<2x16xf32>
    %209 = vector.extract_strided_slice %207 {offsets = [0, 0], sizes = [2, 16], strides = [1, 1]} : vector<2x48xf32> to vector<2x16xf32>
    %210 = arith.addf %208, %209 : vector<2x16xf32>
    %211 = arith.negf %210 : vector<2x16xf32>
    %212 = math.exp %211 : vector<2x16xf32>
    %cst_54 = arith.constant 1.000000e+00 : f32
    %213 = vector.broadcast %cst_54 : f32 to vector<2x16xf32>
    %214 = arith.addf %213, %212 : vector<2x16xf32>
    %215 = arith.divf %213, %214 : vector<2x16xf32>
    %216 = vector.extract_strided_slice %206 {offsets = [0, 16], sizes = [2, 16], strides = [1, 1]} : vector<2x48xf32> to vector<2x16xf32>
    %217 = vector.extract_strided_slice %207 {offsets = [0, 16], sizes = [2, 16], strides = [1, 1]} : vector<2x48xf32> to vector<2x16xf32>
    %218 = arith.addf %216, %217 : vector<2x16xf32>
    %219 = arith.negf %218 : vector<2x16xf32>
    %220 = math.exp %219 : vector<2x16xf32>
    %cst_55 = arith.constant 1.000000e+00 : f32
    %221 = vector.broadcast %cst_55 : f32 to vector<2x16xf32>
    %222 = arith.addf %221, %220 : vector<2x16xf32>
    %223 = arith.divf %221, %222 : vector<2x16xf32>
    %224 = vector.extract_strided_slice %206 {offsets = [0, 32], sizes = [2, 16], strides = [1, 1]} : vector<2x48xf32> to vector<2x16xf32>
    %225 = vector.extract_strided_slice %207 {offsets = [0, 32], sizes = [2, 16], strides = [1, 1]} : vector<2x48xf32> to vector<2x16xf32>
    %226 = vector.broadcast %31 : vector<1x16xf32> to vector<2x16xf32>
    %227 = arith.addf %225, %226 : vector<2x16xf32>
    %228 = arith.mulf %215, %227 : vector<2x16xf32>
    %229 = arith.addf %224, %228 : vector<2x16xf32>
    %230 = math.tanh %229 : vector<2x16xf32>
    %cst_56 = arith.constant 1.000000e+00 : f32
    %231 = vector.broadcast %cst_56 : f32 to vector<2x16xf32>
    %232 = arith.subf %231, %223 : vector<2x16xf32>
    %233 = arith.mulf %232, %230 : vector<2x16xf32>
    %234 = arith.mulf %223, %178 : vector<2x16xf32>
    %235 = arith.addf %233, %234 : vector<2x16xf32>
    %236 = tpu.concatenate %235, %204 in 1 : vector<2x16xf32>, vector<2x16xf32> -> vector<2x32xf32>
    %cst_57 = arith.constant dense<0.000000e+00> : vector<2x64xf32>
    %237 = tpu.matmul %236, %32, %cst_57 {dimension_numbers = #tpu.dot_dimension_numbers<[1], [0], [0], [1], [0, 0, 1, 1], [], []>} : vector<2x32xf32>, vector<32x64xf32>, vector<2x64xf32> -> vector<2x64xf32>
    %238 = vector.broadcast %33 : vector<1x64xf32> to vector<2x64xf32>
    %239 = arith.addf %237, %238 : vector<2x64xf32>
    %240 = vector.extract_strided_slice %239 {offsets = [0, 0], sizes = [2, 16], strides = [1, 1]} : vector<2x64xf32> to vector<2x16xf32>
    %241 = arith.negf %240 : vector<2x16xf32>
    %242 = math.exp %241 : vector<2x16xf32>
    %cst_58 = arith.constant 1.000000e+00 : f32
    %243 = vector.broadcast %cst_58 : f32 to vector<2x16xf32>
    %244 = arith.addf %243, %242 : vector<2x16xf32>
    %245 = arith.divf %243, %244 : vector<2x16xf32>
    %246 = vector.extract_strided_slice %239 {offsets = [0, 16], sizes = [2, 16], strides = [1, 1]} : vector<2x64xf32> to vector<2x16xf32>
    %247 = arith.negf %246 : vector<2x16xf32>
    %248 = math.exp %247 : vector<2x16xf32>
    %cst_59 = arith.constant 1.000000e+00 : f32
    %249 = vector.broadcast %cst_59 : f32 to vector<2x16xf32>
    %250 = arith.addf %249, %248 : vector<2x16xf32>
    %251 = arith.divf %249, %250 : vector<2x16xf32>
    %252 = vector.extract_strided_slice %239 {offsets = [0, 32], sizes = [2, 16], strides = [1, 1]} : vector<2x64xf32> to vector<2x16xf32>
    %253 = vector.extract_strided_slice %239 {offsets = [0, 48], sizes = [2, 16], strides = [1, 1]} : vector<2x64xf32> to vector<2x16xf32>
    %254 = arith.mulf %245, %253 : vector<2x16xf32>
    %255 = arith.addf %252, %254 : vector<2x16xf32>
    %256 = math.tanh %255 : vector<2x16xf32>
    %cst_60 = arith.constant 1.000000e+00 : f32
    %257 = vector.broadcast %cst_60 : f32 to vector<2x16xf32>
    %258 = arith.subf %257, %251 : vector<2x16xf32>
    %259 = arith.mulf %258, %256 : vector<2x16xf32>
    %260 = arith.mulf %251, %204 : vector<2x16xf32>
    %261 = arith.addf %259, %260 : vector<2x16xf32>
    %262 = vector.extract_strided_slice %29 {offsets = [0, 4, 0], sizes = [2, 1, 48], strides = [1, 1, 1]} : vector<2x8x48xf32> to vector<2x1x48xf32>
    %263 = vector.shape_cast %262 : vector<2x1x48xf32> to vector<2x48xf32>
    %cst_61 = arith.constant dense<0.000000e+00> : vector<2x48xf32>
    %264 = tpu.matmul %235, %30, %cst_61 {dimension_numbers = #tpu.dot_dimension_numbers<[1], [0], [0], [1], [0, 0, 1, 1], [], []>} : vector<2x16xf32>, vector<16x48xf32>, vector<2x48xf32> -> vector<2x48xf32>
    %265 = vector.extract_strided_slice %263 {offsets = [0, 0], sizes = [2, 16], strides = [1, 1]} : vector<2x48xf32> to vector<2x16xf32>
    %266 = vector.extract_strided_slice %264 {offsets = [0, 0], sizes = [2, 16], strides = [1, 1]} : vector<2x48xf32> to vector<2x16xf32>
    %267 = arith.addf %265, %266 : vector<2x16xf32>
    %268 = arith.negf %267 : vector<2x16xf32>
    %269 = math.exp %268 : vector<2x16xf32>
    %cst_62 = arith.constant 1.000000e+00 : f32
    %270 = vector.broadcast %cst_62 : f32 to vector<2x16xf32>
    %271 = arith.addf %270, %269 : vector<2x16xf32>
    %272 = arith.divf %270, %271 : vector<2x16xf32>
    %273 = vector.extract_strided_slice %263 {offsets = [0, 16], sizes = [2, 16], strides = [1, 1]} : vector<2x48xf32> to vector<2x16xf32>
    %274 = vector.extract_strided_slice %264 {offsets = [0, 16], sizes = [2, 16], strides = [1, 1]} : vector<2x48xf32> to vector<2x16xf32>
    %275 = arith.addf %273, %274 : vector<2x16xf32>
    %276 = arith.negf %275 : vector<2x16xf32>
    %277 = math.exp %276 : vector<2x16xf32>
    %cst_63 = arith.constant 1.000000e+00 : f32
    %278 = vector.broadcast %cst_63 : f32 to vector<2x16xf32>
    %279 = arith.addf %278, %277 : vector<2x16xf32>
    %280 = arith.divf %278, %279 : vector<2x16xf32>
    %281 = vector.extract_strided_slice %263 {offsets = [0, 32], sizes = [2, 16], strides = [1, 1]} : vector<2x48xf32> to vector<2x16xf32>
    %282 = vector.extract_strided_slice %264 {offsets = [0, 32], sizes = [2, 16], strides = [1, 1]} : vector<2x48xf32> to vector<2x16xf32>
    %283 = vector.broadcast %31 : vector<1x16xf32> to vector<2x16xf32>
    %284 = arith.addf %282, %283 : vector<2x16xf32>
    %285 = arith.mulf %272, %284 : vector<2x16xf32>
    %286 = arith.addf %281, %285 : vector<2x16xf32>
    %287 = math.tanh %286 : vector<2x16xf32>
    %cst_64 = arith.constant 1.000000e+00 : f32
    %288 = vector.broadcast %cst_64 : f32 to vector<2x16xf32>
    %289 = arith.subf %288, %280 : vector<2x16xf32>
    %290 = arith.mulf %289, %287 : vector<2x16xf32>
    %291 = arith.mulf %280, %235 : vector<2x16xf32>
    %292 = arith.addf %290, %291 : vector<2x16xf32>
    %293 = tpu.concatenate %292, %261 in 1 : vector<2x16xf32>, vector<2x16xf32> -> vector<2x32xf32>
    %cst_65 = arith.constant dense<0.000000e+00> : vector<2x64xf32>
    %294 = tpu.matmul %293, %32, %cst_65 {dimension_numbers = #tpu.dot_dimension_numbers<[1], [0], [0], [1], [0, 0, 1, 1], [], []>} : vector<2x32xf32>, vector<32x64xf32>, vector<2x64xf32> -> vector<2x64xf32>
    %295 = vector.broadcast %33 : vector<1x64xf32> to vector<2x64xf32>
    %296 = arith.addf %294, %295 : vector<2x64xf32>
    %297 = vector.extract_strided_slice %296 {offsets = [0, 0], sizes = [2, 16], strides = [1, 1]} : vector<2x64xf32> to vector<2x16xf32>
    %298 = arith.negf %297 : vector<2x16xf32>
    %299 = math.exp %298 : vector<2x16xf32>
    %cst_66 = arith.constant 1.000000e+00 : f32
    %300 = vector.broadcast %cst_66 : f32 to vector<2x16xf32>
    %301 = arith.addf %300, %299 : vector<2x16xf32>
    %302 = arith.divf %300, %301 : vector<2x16xf32>
    %303 = vector.extract_strided_slice %296 {offsets = [0, 16], sizes = [2, 16], strides = [1, 1]} : vector<2x64xf32> to vector<2x16xf32>
    %304 = arith.negf %303 : vector<2x16xf32>
    %305 = math.exp %304 : vector<2x16xf32>
    %cst_67 = arith.constant 1.000000e+00 : f32
    %306 = vector.broadcast %cst_67 : f32 to vector<2x16xf32>
    %307 = arith.addf %306, %305 : vector<2x16xf32>
    %308 = arith.divf %306, %307 : vector<2x16xf32>
    %309 = vector.extract_strided_slice %296 {offsets = [0, 32], sizes = [2, 16], strides = [1, 1]} : vector<2x64xf32> to vector<2x16xf32>
    %310 = vector.extract_strided_slice %296 {offsets = [0, 48], sizes = [2, 16], strides = [1, 1]} : vector<2x64xf32> to vector<2x16xf32>
    %311 = arith.mulf %302, %310 : vector<2x16xf32>
    %312 = arith.addf %309, %311 : vector<2x16xf32>
    %313 = math.tanh %312 : vector<2x16xf32>
    %cst_68 = arith.constant 1.000000e+00 : f32
    %314 = vector.broadcast %cst_68 : f32 to vector<2x16xf32>
    %315 = arith.subf %314, %308 : vector<2x16xf32>
    %316 = arith.mulf %315, %313 : vector<2x16xf32>
    %317 = arith.mulf %308, %261 : vector<2x16xf32>
    %318 = arith.addf %316, %317 : vector<2x16xf32>
    %319 = vector.extract_strided_slice %29 {offsets = [0, 5, 0], sizes = [2, 1, 48], strides = [1, 1, 1]} : vector<2x8x48xf32> to vector<2x1x48xf32>
    %320 = vector.shape_cast %319 : vector<2x1x48xf32> to vector<2x48xf32>
    %cst_69 = arith.constant dense<0.000000e+00> : vector<2x48xf32>
    %321 = tpu.matmul %292, %30, %cst_69 {dimension_numbers = #tpu.dot_dimension_numbers<[1], [0], [0], [1], [0, 0, 1, 1], [], []>} : vector<2x16xf32>, vector<16x48xf32>, vector<2x48xf32> -> vector<2x48xf32>
    %322 = vector.extract_strided_slice %320 {offsets = [0, 0], sizes = [2, 16], strides = [1, 1]} : vector<2x48xf32> to vector<2x16xf32>
    %323 = vector.extract_strided_slice %321 {offsets = [0, 0], sizes = [2, 16], strides = [1, 1]} : vector<2x48xf32> to vector<2x16xf32>
    %324 = arith.addf %322, %323 : vector<2x16xf32>
    %325 = arith.negf %324 : vector<2x16xf32>
    %326 = math.exp %325 : vector<2x16xf32>
    %cst_70 = arith.constant 1.000000e+00 : f32
    %327 = vector.broadcast %cst_70 : f32 to vector<2x16xf32>
    %328 = arith.addf %327, %326 : vector<2x16xf32>
    %329 = arith.divf %327, %328 : vector<2x16xf32>
    %330 = vector.extract_strided_slice %320 {offsets = [0, 16], sizes = [2, 16], strides = [1, 1]} : vector<2x48xf32> to vector<2x16xf32>
    %331 = vector.extract_strided_slice %321 {offsets = [0, 16], sizes = [2, 16], strides = [1, 1]} : vector<2x48xf32> to vector<2x16xf32>
    %332 = arith.addf %330, %331 : vector<2x16xf32>
    %333 = arith.negf %332 : vector<2x16xf32>
    %334 = math.exp %333 : vector<2x16xf32>
    %cst_71 = arith.constant 1.000000e+00 : f32
    %335 = vector.broadcast %cst_71 : f32 to vector<2x16xf32>
    %336 = arith.addf %335, %334 : vector<2x16xf32>
    %337 = arith.divf %335, %336 : vector<2x16xf32>
    %338 = vector.extract_strided_slice %320 {offsets = [0, 32], sizes = [2, 16], strides = [1, 1]} : vector<2x48xf32> to vector<2x16xf32>
    %339 = vector.extract_strided_slice %321 {offsets = [0, 32], sizes = [2, 16], strides = [1, 1]} : vector<2x48xf32> to vector<2x16xf32>
    %340 = vector.broadcast %31 : vector<1x16xf32> to vector<2x16xf32>
    %341 = arith.addf %339, %340 : vector<2x16xf32>
    %342 = arith.mulf %329, %341 : vector<2x16xf32>
    %343 = arith.addf %338, %342 : vector<2x16xf32>
    %344 = math.tanh %343 : vector<2x16xf32>
    %cst_72 = arith.constant 1.000000e+00 : f32
    %345 = vector.broadcast %cst_72 : f32 to vector<2x16xf32>
    %346 = arith.subf %345, %337 : vector<2x16xf32>
    %347 = arith.mulf %346, %344 : vector<2x16xf32>
    %348 = arith.mulf %337, %292 : vector<2x16xf32>
    %349 = arith.addf %347, %348 : vector<2x16xf32>
    %350 = tpu.concatenate %349, %318 in 1 : vector<2x16xf32>, vector<2x16xf32> -> vector<2x32xf32>
    %cst_73 = arith.constant dense<0.000000e+00> : vector<2x64xf32>
    %351 = tpu.matmul %350, %32, %cst_73 {dimension_numbers = #tpu.dot_dimension_numbers<[1], [0], [0], [1], [0, 0, 1, 1], [], []>} : vector<2x32xf32>, vector<32x64xf32>, vector<2x64xf32> -> vector<2x64xf32>
    %352 = vector.broadcast %33 : vector<1x64xf32> to vector<2x64xf32>
    %353 = arith.addf %351, %352 : vector<2x64xf32>
    %354 = vector.extract_strided_slice %353 {offsets = [0, 0], sizes = [2, 16], strides = [1, 1]} : vector<2x64xf32> to vector<2x16xf32>
    %355 = arith.negf %354 : vector<2x16xf32>
    %356 = math.exp %355 : vector<2x16xf32>
    %cst_74 = arith.constant 1.000000e+00 : f32
    %357 = vector.broadcast %cst_74 : f32 to vector<2x16xf32>
    %358 = arith.addf %357, %356 : vector<2x16xf32>
    %359 = arith.divf %357, %358 : vector<2x16xf32>
    %360 = vector.extract_strided_slice %353 {offsets = [0, 16], sizes = [2, 16], strides = [1, 1]} : vector<2x64xf32> to vector<2x16xf32>
    %361 = arith.negf %360 : vector<2x16xf32>
    %362 = math.exp %361 : vector<2x16xf32>
    %cst_75 = arith.constant 1.000000e+00 : f32
    %363 = vector.broadcast %cst_75 : f32 to vector<2x16xf32>
    %364 = arith.addf %363, %362 : vector<2x16xf32>
    %365 = arith.divf %363, %364 : vector<2x16xf32>
    %366 = vector.extract_strided_slice %353 {offsets = [0, 32], sizes = [2, 16], strides = [1, 1]} : vector<2x64xf32> to vector<2x16xf32>
    %367 = vector.extract_strided_slice %353 {offsets = [0, 48], sizes = [2, 16], strides = [1, 1]} : vector<2x64xf32> to vector<2x16xf32>
    %368 = arith.mulf %359, %367 : vector<2x16xf32>
    %369 = arith.addf %366, %368 : vector<2x16xf32>
    %370 = math.tanh %369 : vector<2x16xf32>
    %cst_76 = arith.constant 1.000000e+00 : f32
    %371 = vector.broadcast %cst_76 : f32 to vector<2x16xf32>
    %372 = arith.subf %371, %365 : vector<2x16xf32>
    %373 = arith.mulf %372, %370 : vector<2x16xf32>
    %374 = arith.mulf %365, %318 : vector<2x16xf32>
    %375 = arith.addf %373, %374 : vector<2x16xf32>
    %376 = vector.extract_strided_slice %29 {offsets = [0, 6, 0], sizes = [2, 1, 48], strides = [1, 1, 1]} : vector<2x8x48xf32> to vector<2x1x48xf32>
    %377 = vector.shape_cast %376 : vector<2x1x48xf32> to vector<2x48xf32>
    %cst_77 = arith.constant dense<0.000000e+00> : vector<2x48xf32>
    %378 = tpu.matmul %349, %30, %cst_77 {dimension_numbers = #tpu.dot_dimension_numbers<[1], [0], [0], [1], [0, 0, 1, 1], [], []>} : vector<2x16xf32>, vector<16x48xf32>, vector<2x48xf32> -> vector<2x48xf32>
    %379 = vector.extract_strided_slice %377 {offsets = [0, 0], sizes = [2, 16], strides = [1, 1]} : vector<2x48xf32> to vector<2x16xf32>
    %380 = vector.extract_strided_slice %378 {offsets = [0, 0], sizes = [2, 16], strides = [1, 1]} : vector<2x48xf32> to vector<2x16xf32>
    %381 = arith.addf %379, %380 : vector<2x16xf32>
    %382 = arith.negf %381 : vector<2x16xf32>
    %383 = math.exp %382 : vector<2x16xf32>
    %cst_78 = arith.constant 1.000000e+00 : f32
    %384 = vector.broadcast %cst_78 : f32 to vector<2x16xf32>
    %385 = arith.addf %384, %383 : vector<2x16xf32>
    %386 = arith.divf %384, %385 : vector<2x16xf32>
    %387 = vector.extract_strided_slice %377 {offsets = [0, 16], sizes = [2, 16], strides = [1, 1]} : vector<2x48xf32> to vector<2x16xf32>
    %388 = vector.extract_strided_slice %378 {offsets = [0, 16], sizes = [2, 16], strides = [1, 1]} : vector<2x48xf32> to vector<2x16xf32>
    %389 = arith.addf %387, %388 : vector<2x16xf32>
    %390 = arith.negf %389 : vector<2x16xf32>
    %391 = math.exp %390 : vector<2x16xf32>
    %cst_79 = arith.constant 1.000000e+00 : f32
    %392 = vector.broadcast %cst_79 : f32 to vector<2x16xf32>
    %393 = arith.addf %392, %391 : vector<2x16xf32>
    %394 = arith.divf %392, %393 : vector<2x16xf32>
    %395 = vector.extract_strided_slice %377 {offsets = [0, 32], sizes = [2, 16], strides = [1, 1]} : vector<2x48xf32> to vector<2x16xf32>
    %396 = vector.extract_strided_slice %378 {offsets = [0, 32], sizes = [2, 16], strides = [1, 1]} : vector<2x48xf32> to vector<2x16xf32>
    %397 = vector.broadcast %31 : vector<1x16xf32> to vector<2x16xf32>
    %398 = arith.addf %396, %397 : vector<2x16xf32>
    %399 = arith.mulf %386, %398 : vector<2x16xf32>
    %400 = arith.addf %395, %399 : vector<2x16xf32>
    %401 = math.tanh %400 : vector<2x16xf32>
    %cst_80 = arith.constant 1.000000e+00 : f32
    %402 = vector.broadcast %cst_80 : f32 to vector<2x16xf32>
    %403 = arith.subf %402, %394 : vector<2x16xf32>
    %404 = arith.mulf %403, %401 : vector<2x16xf32>
    %405 = arith.mulf %394, %349 : vector<2x16xf32>
    %406 = arith.addf %404, %405 : vector<2x16xf32>
    %407 = tpu.concatenate %406, %375 in 1 : vector<2x16xf32>, vector<2x16xf32> -> vector<2x32xf32>
    %cst_81 = arith.constant dense<0.000000e+00> : vector<2x64xf32>
    %408 = tpu.matmul %407, %32, %cst_81 {dimension_numbers = #tpu.dot_dimension_numbers<[1], [0], [0], [1], [0, 0, 1, 1], [], []>} : vector<2x32xf32>, vector<32x64xf32>, vector<2x64xf32> -> vector<2x64xf32>
    %409 = vector.broadcast %33 : vector<1x64xf32> to vector<2x64xf32>
    %410 = arith.addf %408, %409 : vector<2x64xf32>
    %411 = vector.extract_strided_slice %410 {offsets = [0, 0], sizes = [2, 16], strides = [1, 1]} : vector<2x64xf32> to vector<2x16xf32>
    %412 = arith.negf %411 : vector<2x16xf32>
    %413 = math.exp %412 : vector<2x16xf32>
    %cst_82 = arith.constant 1.000000e+00 : f32
    %414 = vector.broadcast %cst_82 : f32 to vector<2x16xf32>
    %415 = arith.addf %414, %413 : vector<2x16xf32>
    %416 = arith.divf %414, %415 : vector<2x16xf32>
    %417 = vector.extract_strided_slice %410 {offsets = [0, 16], sizes = [2, 16], strides = [1, 1]} : vector<2x64xf32> to vector<2x16xf32>
    %418 = arith.negf %417 : vector<2x16xf32>
    %419 = math.exp %418 : vector<2x16xf32>
    %cst_83 = arith.constant 1.000000e+00 : f32
    %420 = vector.broadcast %cst_83 : f32 to vector<2x16xf32>
    %421 = arith.addf %420, %419 : vector<2x16xf32>
    %422 = arith.divf %420, %421 : vector<2x16xf32>
    %423 = vector.extract_strided_slice %410 {offsets = [0, 32], sizes = [2, 16], strides = [1, 1]} : vector<2x64xf32> to vector<2x16xf32>
    %424 = vector.extract_strided_slice %410 {offsets = [0, 48], sizes = [2, 16], strides = [1, 1]} : vector<2x64xf32> to vector<2x16xf32>
    %425 = arith.mulf %416, %424 : vector<2x16xf32>
    %426 = arith.addf %423, %425 : vector<2x16xf32>
    %427 = math.tanh %426 : vector<2x16xf32>
    %cst_84 = arith.constant 1.000000e+00 : f32
    %428 = vector.broadcast %cst_84 : f32 to vector<2x16xf32>
    %429 = arith.subf %428, %422 : vector<2x16xf32>
    %430 = arith.mulf %429, %427 : vector<2x16xf32>
    %431 = arith.mulf %422, %375 : vector<2x16xf32>
    %432 = arith.addf %430, %431 : vector<2x16xf32>
    %433 = vector.extract_strided_slice %29 {offsets = [0, 7, 0], sizes = [2, 1, 48], strides = [1, 1, 1]} : vector<2x8x48xf32> to vector<2x1x48xf32>
    %434 = vector.shape_cast %433 : vector<2x1x48xf32> to vector<2x48xf32>
    %cst_85 = arith.constant dense<0.000000e+00> : vector<2x48xf32>
    %435 = tpu.matmul %406, %30, %cst_85 {dimension_numbers = #tpu.dot_dimension_numbers<[1], [0], [0], [1], [0, 0, 1, 1], [], []>} : vector<2x16xf32>, vector<16x48xf32>, vector<2x48xf32> -> vector<2x48xf32>
    %436 = vector.extract_strided_slice %434 {offsets = [0, 0], sizes = [2, 16], strides = [1, 1]} : vector<2x48xf32> to vector<2x16xf32>
    %437 = vector.extract_strided_slice %435 {offsets = [0, 0], sizes = [2, 16], strides = [1, 1]} : vector<2x48xf32> to vector<2x16xf32>
    %438 = arith.addf %436, %437 : vector<2x16xf32>
    %439 = arith.negf %438 : vector<2x16xf32>
    %440 = math.exp %439 : vector<2x16xf32>
    %cst_86 = arith.constant 1.000000e+00 : f32
    %441 = vector.broadcast %cst_86 : f32 to vector<2x16xf32>
    %442 = arith.addf %441, %440 : vector<2x16xf32>
    %443 = arith.divf %441, %442 : vector<2x16xf32>
    %444 = vector.extract_strided_slice %434 {offsets = [0, 16], sizes = [2, 16], strides = [1, 1]} : vector<2x48xf32> to vector<2x16xf32>
    %445 = vector.extract_strided_slice %435 {offsets = [0, 16], sizes = [2, 16], strides = [1, 1]} : vector<2x48xf32> to vector<2x16xf32>
    %446 = arith.addf %444, %445 : vector<2x16xf32>
    %447 = arith.negf %446 : vector<2x16xf32>
    %448 = math.exp %447 : vector<2x16xf32>
    %cst_87 = arith.constant 1.000000e+00 : f32
    %449 = vector.broadcast %cst_87 : f32 to vector<2x16xf32>
    %450 = arith.addf %449, %448 : vector<2x16xf32>
    %451 = arith.divf %449, %450 : vector<2x16xf32>
    %452 = vector.extract_strided_slice %434 {offsets = [0, 32], sizes = [2, 16], strides = [1, 1]} : vector<2x48xf32> to vector<2x16xf32>
    %453 = vector.extract_strided_slice %435 {offsets = [0, 32], sizes = [2, 16], strides = [1, 1]} : vector<2x48xf32> to vector<2x16xf32>
    %454 = vector.broadcast %31 : vector<1x16xf32> to vector<2x16xf32>
    %455 = arith.addf %453, %454 : vector<2x16xf32>
    %456 = arith.mulf %443, %455 : vector<2x16xf32>
    %457 = arith.addf %452, %456 : vector<2x16xf32>
    %458 = math.tanh %457 : vector<2x16xf32>
    %cst_88 = arith.constant 1.000000e+00 : f32
    %459 = vector.broadcast %cst_88 : f32 to vector<2x16xf32>
    %460 = arith.subf %459, %451 : vector<2x16xf32>
    %461 = arith.mulf %460, %458 : vector<2x16xf32>
    %462 = arith.mulf %451, %406 : vector<2x16xf32>
    %463 = arith.addf %461, %462 : vector<2x16xf32>
    %464 = tpu.concatenate %463, %432 in 1 : vector<2x16xf32>, vector<2x16xf32> -> vector<2x32xf32>
    %cst_89 = arith.constant dense<0.000000e+00> : vector<2x64xf32>
    %465 = tpu.matmul %464, %32, %cst_89 {dimension_numbers = #tpu.dot_dimension_numbers<[1], [0], [0], [1], [0, 0, 1, 1], [], []>} : vector<2x32xf32>, vector<32x64xf32>, vector<2x64xf32> -> vector<2x64xf32>
    %466 = vector.broadcast %33 : vector<1x64xf32> to vector<2x64xf32>
    %467 = arith.addf %465, %466 : vector<2x64xf32>
    %468 = vector.extract_strided_slice %467 {offsets = [0, 0], sizes = [2, 16], strides = [1, 1]} : vector<2x64xf32> to vector<2x16xf32>
    %469 = arith.negf %468 : vector<2x16xf32>
    %470 = math.exp %469 : vector<2x16xf32>
    %cst_90 = arith.constant 1.000000e+00 : f32
    %471 = vector.broadcast %cst_90 : f32 to vector<2x16xf32>
    %472 = arith.addf %471, %470 : vector<2x16xf32>
    %473 = arith.divf %471, %472 : vector<2x16xf32>
    %474 = vector.extract_strided_slice %467 {offsets = [0, 16], sizes = [2, 16], strides = [1, 1]} : vector<2x64xf32> to vector<2x16xf32>
    %475 = arith.negf %474 : vector<2x16xf32>
    %476 = math.exp %475 : vector<2x16xf32>
    %cst_91 = arith.constant 1.000000e+00 : f32
    %477 = vector.broadcast %cst_91 : f32 to vector<2x16xf32>
    %478 = arith.addf %477, %476 : vector<2x16xf32>
    %479 = arith.divf %477, %478 : vector<2x16xf32>
    %480 = vector.extract_strided_slice %467 {offsets = [0, 32], sizes = [2, 16], strides = [1, 1]} : vector<2x64xf32> to vector<2x16xf32>
    %481 = vector.extract_strided_slice %467 {offsets = [0, 48], sizes = [2, 16], strides = [1, 1]} : vector<2x64xf32> to vector<2x16xf32>
    %482 = arith.mulf %473, %481 : vector<2x16xf32>
    %483 = arith.addf %480, %482 : vector<2x16xf32>
    %484 = math.tanh %483 : vector<2x16xf32>
    %cst_92 = arith.constant 1.000000e+00 : f32
    %485 = vector.broadcast %cst_92 : f32 to vector<2x16xf32>
    %486 = arith.subf %485, %479 : vector<2x16xf32>
    %487 = arith.mulf %486, %484 : vector<2x16xf32>
    %488 = arith.mulf %479, %432 : vector<2x16xf32>
    %489 = arith.addf %487, %488 : vector<2x16xf32>
    %490 = tpu.concatenate %489, %0 in 1 : vector<2x16xf32>, vector<2x12xf32> -> vector<2x28xf32>
    %c0_93 = arith.constant 0 : index
    %c0_94 = arith.constant 0 : index
    %491 = vector.load %arg12[%c0_93, %c0_94] : memref<28x8xf32, #tpu.memory_space<vmem>>, vector<28x8xf32>
    %cst_95 = arith.constant dense<0.000000e+00> : vector<2x8xf32>
    %492 = tpu.matmul %490, %491, %cst_95 {dimension_numbers = #tpu.dot_dimension_numbers<[1], [0], [0], [1], [0, 0, 1, 1], [], []>} : vector<2x28xf32>, vector<28x8xf32>, vector<2x8xf32> -> vector<2x8xf32>
    %c0_96 = arith.constant 0 : index
    %c0_97 = arith.constant 0 : index
    %493 = vector.load %arg13[%c0_96, %c0_97] : memref<1x8xf32, #tpu.memory_space<vmem>>, vector<1x8xf32>
    %494 = vector.broadcast %493 : vector<1x8xf32> to vector<2x8xf32>
    %495 = arith.addf %492, %494 : vector<2x8xf32>
    %c0_98 = arith.constant 0 : index
    %c0_99 = arith.constant 0 : index
    %496 = vector.load %arg14[%c0_98, %c0_99] : memref<2x8xf32, #tpu.memory_space<vmem>>, vector<2x8xf32>
    tpu.vector_store %arg14[%c0_98, %c0_99], %495 {strides = array<i32>} : memref<2x8xf32, #tpu.memory_space<vmem>>, vector<2x8xf32>,
    return
  }
}

</mosaic_0001>

<llo_original>
// kernel: tpu_custom_call.1
$region0: #{tpu_custom_call.1}
  #allocation0 [shape = 'u32[]', space=smem, size = 0x4, offset = 0x4, fixed_abs, tag = 'smem constant byte address 0x4 - core index']
  #allocation1 [shape = 'u32[144,128]{1,0:T(1,128)}', space=vmem, size = 0x12000, scoped, tag = 'internal scratch']
  %s0 = inlined_call_operand.vmem [shape: f32[2,12], index: 0, kind: input, shape index: {}]
  %s1 = inlined_call_operand.vmem [shape: f32[16,8], index: 1, kind: input, shape index: {}]
  %s2 = inlined_call_operand.vmem [shape: f32[12,64], index: 2, kind: input, shape index: {}]
  %s3 = inlined_call_operand.vmem [shape: f32[1,64], index: 3, kind: input, shape index: {}]
  %s4 = inlined_call_operand.vmem [shape: f32[64,32], index: 4, kind: input, shape index: {}]
  %s5 = inlined_call_operand.vmem [shape: f32[1,32], index: 5, kind: input, shape index: {}]
  %s6 = inlined_call_operand.vmem [shape: f32[8,48], index: 6, kind: input, shape index: {}]
  %s7 = inlined_call_operand.vmem [shape: f32[1,48], index: 7, kind: input, shape index: {}]
  %s8 = inlined_call_operand.vmem [shape: f32[16,48], index: 8, kind: input, shape index: {}]
  %s9 = inlined_call_operand.vmem [shape: f32[1,16], index: 9, kind: input, shape index: {}]
  %s10 = inlined_call_operand.vmem [shape: f32[32,64], index: 10, kind: input, shape index: {}]
  %s11 = inlined_call_operand.vmem [shape: f32[1,64], index: 11, kind: input, shape index: {}]
  %s12 = inlined_call_operand.vmem [shape: f32[28,8], index: 12, kind: input, shape index: {}]
  %s13 = inlined_call_operand.vmem [shape: f32[1,8], index: 13, kind: input, shape index: {}]
  %s14 = inlined_call_operand.hbm [shape: f32[2,8], index: 14, kind: output, shape index: {}]
  %s15 = sld [smem:[#allocation0]]
  $region66: #{tpu_custom_call.1} parent=0
    _
  %s17 = ssub.s32 1, %s15
  %s18 = scalar_select 0, %s17, %s15
  $region1: #{tpu_custom_call.1} parent=0
    #allocation2 [shape = 'u8[1024]{0}', space=vmem, size = 0x400, scoped, tag = 'output window, operand 0, single buffered']
    #allocation3 [shape = 's32[1]{0}', space=sflag, size = 0x4, scoped, tag = 'scoped memory for tpu_custom_call.1']
    %19 = vsyncpa [#allocation3], 0
    // Predicated region
    $region2: #{tpu_custom_call.1} parent=1 // pred_check
      _
    $region3: #{tpu_custom_call.1} parent=1 // pred_check_branch
      %21 = sbr.rel (0) target = $region5
    $region4: #{tpu_custom_call.1} parent=1 // pred_region
      _
    $region5: #{tpu_custom_call.1} parent=1 // pred_fallthru
      _
    // Predicated region
    $region6: #{tpu_custom_call.1} parent=1 // pred_check
      _
    $region7: #{tpu_custom_call.1} parent=1 // pred_check_branch
      %23 = sbr.rel (0) target = $region9
    $region8: #{tpu_custom_call.1} parent=1 // pred_region
      _
    $region9: #{tpu_custom_call.1} parent=1 // pred_fallthru
      _
    // Predicated region
    $region10: #{tpu_custom_call.1} parent=1 // pred_check
      _
    $region11: #{tpu_custom_call.1} parent=1 // pred_check_branch
      %25 = sbr.rel (0) target = $region13
    $region12: #{tpu_custom_call.1} parent=1 // pred_region
      _
    $region13: #{tpu_custom_call.1} parent=1 // pred_fallthru
      _
    // Predicated region
    $region14: #{tpu_custom_call.1} parent=1 // pred_check
      _
    $region15: #{tpu_custom_call.1} parent=1 // pred_check_branch
      %27 = sbr.rel (0) target = $region17
    $region16: #{tpu_custom_call.1} parent=1 // pred_region
      _
    $region17: #{tpu_custom_call.1} parent=1 // pred_fallthru
      _
    // Predicated region
    $region18: #{tpu_custom_call.1} parent=1 // pred_check
      _
    $region19: #{tpu_custom_call.1} parent=1 // pred_check_branch
      %29 = sbr.rel (0) target = $region21
    $region20: #{tpu_custom_call.1} parent=1 // pred_region
      _
    $region21: #{tpu_custom_call.1} parent=1 // pred_fallthru
      _
    // Predicated region
    $region22: #{tpu_custom_call.1} parent=1 // pred_check
      _
    $region23: #{tpu_custom_call.1} parent=1 // pred_check_branch
      %31 = sbr.rel (0) target = $region25
    $region24: #{tpu_custom_call.1} parent=1 // pred_region
      _
    $region25: #{tpu_custom_call.1} parent=1 // pred_fallthru
      _
    // Predicated region
    $region26: #{tpu_custom_call.1} parent=1 // pred_check
      _
    $region27: #{tpu_custom_call.1} parent=1 // pred_check_branch
      %33 = sbr.rel (0) target = $region29
    $region28: #{tpu_custom_call.1} parent=1 // pred_region
      _
    $region29: #{tpu_custom_call.1} parent=1 // pred_fallthru
      _
    // Predicated region
    $region30: #{tpu_custom_call.1} parent=1 // pred_check
      _
    $region31: #{tpu_custom_call.1} parent=1 // pred_check_branch
      %35 = sbr.rel (0) target = $region33
    $region32: #{tpu_custom_call.1} parent=1 // pred_region
      _
    $region33: #{tpu_custom_call.1} parent=1 // pred_fallthru
      _
    // Predicated region
    $region34: #{tpu_custom_call.1} parent=1 // pred_check
      _
    $region35: #{tpu_custom_call.1} parent=1 // pred_check_branch
      %37 = sbr.rel (0) target = $region37
    $region36: #{tpu_custom_call.1} parent=1 // pred_region
      _
    $region37: #{tpu_custom_call.1} parent=1 // pred_fallthru
      _
    // Predicated region
    $region38: #{tpu_custom_call.1} parent=1 // pred_check
      _
    $region39: #{tpu_custom_call.1} parent=1 // pred_check_branch
      %39 = sbr.rel (0) target = $region41
    $region40: #{tpu_custom_call.1} parent=1 // pred_region
      _
    $region41: #{tpu_custom_call.1} parent=1 // pred_fallthru
      _
    // Predicated region
    $region42: #{tpu_custom_call.1} parent=1 // pred_check
      _
    $region43: #{tpu_custom_call.1} parent=1 // pred_check_branch
      %41 = sbr.rel (0) target = $region45
    $region44: #{tpu_custom_call.1} parent=1 // pred_region
      _
    $region45: #{tpu_custom_call.1} parent=1 // pred_fallthru
      _
    // Predicated region
    $region46: #{tpu_custom_call.1} parent=1 // pred_check
      _
    $region47: #{tpu_custom_call.1} parent=1 // pred_check_branch
      %43 = sbr.rel (0) target = $region49
    $region48: #{tpu_custom_call.1} parent=1 // pred_region
      _
    $region49: #{tpu_custom_call.1} parent=1 // pred_fallthru
      _
    // Predicated region
    $region50: #{tpu_custom_call.1} parent=1 // pred_check
      _
    $region51: #{tpu_custom_call.1} parent=1 // pred_check_branch
      %45 = sbr.rel (0) target = $region53
    $region52: #{tpu_custom_call.1} parent=1 // pred_region
      _
    $region53: #{tpu_custom_call.1} parent=1 // pred_fallthru
      _
    // Predicated region
    $region54: #{tpu_custom_call.1} parent=1 // pred_check
      _
    $region55: #{tpu_custom_call.1} parent=1 // pred_check_branch
      %47 = sbr.rel (0) target = $region57
    $region56: #{tpu_custom_call.1} parent=1 // pred_region
      _
    $region57: #{tpu_custom_call.1} parent=1 // pred_fallthru
      _
    %v48 = vld [vmem:[%s0] sm:$0x3]
    %v49 = vld [vmem:[%s2] sm:$0xff]
    %v50 = vld [vmem:[%s2 + $0x8] sm:$0xf]
    %v51 = vld [vmem:[%s3] sm:$0x1]
    %v53 = vlaneseq
    %v54 = vshrl.u32 %v53, 7
    %v55 = vsub.s32 0, %v54
    %v56 = vrot.slane %v51, %v55
    %vm58 = vcmask 97280
    %v60 = vsel %vm58, %v48, 0
    %vm62 = vcmask 1043456
    %v64 = vsel %vm62, %v50, 0
    %66 = vmatprep.subr.mxu0 0.0
    %67 = vmatpush1.msra.mxu0 %v49
    %68 = vmatprep.subr.mxu0 0.0
    %69 = vmatpush1.msra.mxu0 %v64
    %70 = vmatprep.subr.mxu0 0.0
    %71 = vmatpush1.msra.mxu0 0.0
    %72 = vmatprep.subr.mxu0 0.0
    %73 = vmatpush1.msra.mxu0 0.0
    %74 = vmatprep.subr.mxu0 0.0
    %75 = vmatpush1.msra.mxu0 0.0
    %76 = vmatprep.subr.mxu0 0.0
    %77 = vmatpush1.msra.mxu0 0.0
    %78 = vmatprep.subr.mxu0 0.0
    %79 = vmatpush1.msra.mxu0 0.0
    %80 = vmatprep.subr.mxu0 0.0
    %81 = vmatpush1.msra.mxu0 0.0
    %82 = vmatprep.subr.mxu0 0.0
    %83 = vmatpush1.msra.mxu0 0.0
    %84 = vmatprep.subr.mxu0 0.0
    %85 = vmatpush1.msra.mxu0 0.0
    %86 = vmatprep.subr.mxu0 0.0
    %87 = vmatpush1.msra.mxu0 0.0
    %88 = vmatprep.subr.mxu0 0.0
    %89 = vmatpush1.msra.mxu0 0.0
    %90 = vmatprep.subr.mxu0 0.0
    %91 = vmatpush1.msra.mxu0 0.0
    %92 = vmatprep.subr.mxu0 0.0
    %93 = vmatpush1.msra.mxu0 0.0
    %94 = vmatprep.subr.mxu0 0.0
    %95 = vmatpush1.msra.mxu0 0.0
    %96 = vmatprep.subr.mxu0 0.0
    %97 = vmatpush1.msra.mxu0 0.0
    %98 = vmatprep.subr.mxu0 0.0
    %99 = vmatpush1.msra.mxu0 0.0
    %100 = vmatprep.subr.mxu0 0.0
    %101 = vmatpush1.msra.mxu0 0.0
    %102 = vmatprep.subr.mxu0 0.0
    %103 = vmatpush1.msra.mxu0 0.0
    %104 = vmatprep.subr.mxu0 0.0
    %105 = vmatpush1.msra.mxu0 0.0
    %106 = vmatprep.subr.mxu0 0.0
    %107 = vmatpush1.msra.mxu0 0.0
    %108 = vmatprep.subr.mxu0 0.0
    %109 = vmatpush1.msra.mxu0 0.0
    %110 = vmatprep.subr.mxu0 0.0
    %111 = vmatpush1.msra.mxu0 0.0
    %112 = vmatprep.subr.mxu0 0.0
    %113 = vmatpush1.msra.mxu0 0.0
    %114 = vmatprep.subr.mxu0 0.0
    %115 = vmatpush1.msra.mxu0 0.0
    %116 = vmatprep.subr.mxu0 0.0
    %117 = vmatpush1.msra.mxu0 0.0
    %118 = vmatprep.subr.mxu0 0.0
    %119 = vmatpush1.msra.mxu0 0.0
    %120 = vmatprep.subr.mxu0 0.0
    %121 = vmatpush1.msra.mxu0 0.0
    %122 = vmatprep.subr.mxu0 0.0
    %123 = vmatpush1.msra.mxu0 0.0
    %124 = vmatprep.subr.mxu0 0.0
    %125 = vmatpush1.msra.mxu0 0.0
    %126 = vmatprep.subr.mxu0 0.0
    %127 = vmatpush1.msra.mxu0 0.0
    %128 = vmatprep.subr.mxu0 0.0
    %129 = vmatpush1.msra.mxu0 0.0
    %130 = vmatprep.mubr.f32.mxu0 0.0
    %131 = vmatmul.mubr.f32.gmra.mrb[0].mxu0 %v60
    %v132 = vpop.f32.mrb[0].mxu0
    %v133 = vadd.f32 %v56, %v132
    %v134 = vpop.f32.mrb[0].mxu0
    %135 = vdwg.mxu0
    %vm136 = vcmp.ge.f32.partialorder %v133, 0.0
    %v137 = vmul.f32 %v133, 0.1
    %v138 = vsel %vm136, %v133, %v137
    %v139 = vld [vmem:[%s4] sm:$0xff]
    %v140 = vld [vmem:[%s4 + $0x8] sm:$0xff]
    %v141 = vld [vmem:[%s4 + $0x10] sm:$0xff]
    %v142 = vld [vmem:[%s4 + $0x18] sm:$0xff]
    %v143 = vld [vmem:[%s4 + $0x20] sm:$0xff]
    %v144 = vld [vmem:[%s4 + $0x28] sm:$0xff]
    %v145 = vld [vmem:[%s4 + $0x30] sm:$0xff]
    %v146 = vld [vmem:[%s4 + $0x38] sm:$0xff]
    %v147 = vld [vmem:[%s5] sm:$0x1]
    %v149 = vlaneseq
    %v150 = vshrl.u32 %v149, 7
    %v151 = vsub.s32 0, %v150
    %v152 = vrot.slane %v147, %v151
    %vm154 = vcmask 523264
    %v156 = vsel %vm154, %v138, 0
    %158 = vmatprep.subr.mxu0 0.0
    %159 = vmatpush1.msra.mxu0 %v139
    %160 = vmatprep.subr.mxu0 0.0
    %161 = vmatpush1.msra.mxu0 %v140
    %162 = vmatprep.subr.mxu0 0.0
    %163 = vmatpush1.msra.mxu0 %v141
    %164 = vmatprep.subr.mxu0 0.0
    %165 = vmatpush1.msra.mxu0 %v142
    %166 = vmatprep.subr.mxu0 0.0
    %167 = vmatpush1.msra.mxu0 %v143
    %168 = vmatprep.subr.mxu0 0.0
    %169 = vmatpush1.msra.mxu0 %v144
    %170 = vmatprep.subr.mxu0 0.0
    %171 = vmatpush1.msra.mxu0 %v145
    %172 = vmatprep.subr.mxu0 0.0
    %173 = vmatpush1.msra.mxu0 %v146
    %174 = vmatprep.subr.mxu0 0.0
    %175 = vmatpush1.msra.mxu0 0.0
    %176 = vmatprep.subr.mxu0 0.0
    %177 = vmatpush1.msra.mxu0 0.0
    %178 = vmatprep.subr.mxu0 0.0
    %179 = vmatpush1.msra.mxu0 0.0
    %180 = vmatprep.subr.mxu0 0.0
    %181 = vmatpush1.msra.mxu0 0.0
    %182 = vmatprep.subr.mxu0 0.0
    %183 = vmatpush1.msra.mxu0 0.0
    %184 = vmatprep.subr.mxu0 0.0
    %185 = vmatpush1.msra.mxu0 0.0
    %186 = vmatprep.subr.mxu0 0.0
    %187 = vmatpush1.msra.mxu0 0.0
    %188 = vmatprep.subr.mxu0 0.0
    %189 = vmatpush1.msra.mxu0 0.0
    %190 = vmatprep.subr.mxu0 0.0
    %191 = vmatpush1.msra.mxu0 0.0
    %192 = vmatprep.subr.mxu0 0.0
    %193 = vmatpush1.msra.mxu0 0.0
    %194 = vmatprep.subr.mxu0 0.0
    %195 = vmatpush1.msra.mxu0 0.0
    %196 = vmatprep.subr.mxu0 0.0
    %197 = vmatpush1.msra.mxu0 0.0
    %198 = vmatprep.subr.mxu0 0.0
    %199 = vmatpush1.msra.mxu0 0.0
    %200 = vmatprep.subr.mxu0 0.0
    %201 = vmatpush1.msra.mxu0 0.0
    %202 = vmatprep.subr.mxu0 0.0
    %203 = vmatpush1.msra.mxu0 0.0
    %204 = vmatprep.subr.mxu0 0.0
    %205 = vmatpush1.msra.mxu0 0.0
    %206 = vmatprep.subr.mxu0 0.0
    %207 = vmatpush1.msra.mxu0 0.0
    %208 = vmatprep.subr.mxu0 0.0
    %209 = vmatpush1.msra.mxu0 0.0
    %210 = vmatprep.subr.mxu0 0.0
    %211 = vmatpush1.msra.mxu0 0.0
    %212 = vmatprep.subr.mxu0 0.0
    %213 = vmatpush1.msra.mxu0 0.0
    %214 = vmatprep.subr.mxu0 0.0
    %215 = vmatpush1.msra.mxu0 0.0
    %216 = vmatprep.subr.mxu0 0.0
    %217 = vmatpush1.msra.mxu0 0.0
    %218 = vmatprep.subr.mxu0 0.0
    %219 = vmatpush1.msra.mxu0 0.0
    %220 = vmatprep.subr.mxu0 0.0
    %221 = vmatpush1.msra.mxu0 0.0
    %222 = vmatprep.mubr.f32.mxu0 0.0
    %223 = vmatmul.mubr.f32.gmra.mrb[0].mxu0 %v156
    %v224 = vpop.f32.mrb[0].mxu0
    %v225 = vadd.f32 %v152, %v224
    %v226 = vpop.f32.mrb[0].mxu0
    %227 = vdwg.mxu0
    %vm228 = vcmp.ge.f32.partialorder %v225, 0.0
    %v229 = vmul.f32 %v225, 0.1
    %v230 = vsel %vm228, %v225, %v229
    %v231 = vld [vmem:[%s1] sm:$0xff]
    %v232 = vld [vmem:[%s1 + $0x8] sm:$0xff]
    %v233 = vld [vmem:[%s6] sm:$0xff]
    %v234 = vld [vmem:[%s7] sm:$0x1]
    %v236 = vlaneseq
    %v237 = vshrl.u32 %v236, 7
    %v238 = vsub.s32 0, %v237
    %v239 = vrot.slane %v234, %v238
    %vm241 = vcmask 64512
    %v243 = vsel %vm241, %v231, 0
    %v246 = vsel %vm241, %v232, 0
    %248 = vmatprep.subr.mxu0 0.0
    %249 = vmatpush1.msra.mxu0 %v233
    %250 = vmatprep.subr.mxu0 0.0
    %251 = vmatpush1.msra.mxu0 0.0
    %252 = vmatprep.subr.mxu0 0.0
    %253 = vmatpush1.msra.mxu0 0.0
    %254 = vmatprep.subr.mxu0 0.0
    %255 = vmatpush1.msra.mxu0 0.0
    %256 = vmatprep.subr.mxu0 0.0
    %257 = vmatpush1.msra.mxu0 0.0
    %258 = vmatprep.subr.mxu0 0.0
    %259 = vmatpush1.msra.mxu0 0.0
    %260 = vmatprep.subr.mxu0 0.0
    %261 = vmatpush1.msra.mxu0 0.0
    %262 = vmatprep.subr.mxu0 0.0
    %263 = vmatpush1.msra.mxu0 0.0
    %264 = vmatprep.subr.mxu0 0.0
    %265 = vmatpush1.msra.mxu0 0.0
    %266 = vmatprep.subr.mxu0 0.0
    %267 = vmatpush1.msra.mxu0 0.0
    %268 = vmatprep.subr.mxu0 0.0
    %269 = vmatpush1.msra.mxu0 0.0
    %270 = vmatprep.subr.mxu0 0.0
    %271 = vmatpush1.msra.mxu0 0.0
    %272 = vmatprep.subr.mxu0 0.0
    %273 = vmatpush1.msra.mxu0 0.0
    %274 = vmatprep.subr.mxu0 0.0
    %275 = vmatpush1.msra.mxu0 0.0
    %276 = vmatprep.subr.mxu0 0.0
    %277 = vmatpush1.msra.mxu0 0.0
    %278 = vmatprep.subr.mxu0 0.0
    %279 = vmatpush1.msra.mxu0 0.0
    %280 = vmatprep.subr.mxu0 0.0
    %281 = vmatpush1.msra.mxu0 0.0
    %282 = vmatprep.subr.mxu0 0.0
    %283 = vmatpush1.msra.mxu0 0.0
    %284 = vmatprep.subr.mxu0 0.0
    %285 = vmatpush1.msra.mxu0 0.0
    %286 = vmatprep.subr.mxu0 0.0
    %287 = vmatpush1.msra.mxu0 0.0
    %288 = vmatprep.subr.mxu0 0.0
    %289 = vmatpush1.msra.mxu0 0.0
    %290 = vmatprep.subr.mxu0 0.0
    %291 = vmatpush1.msra.mxu0 0.0
    %292 = vmatprep.subr.mxu0 0.0
    %293 = vmatpush1.msra.mxu0 0.0
    %294 = vmatprep.subr.mxu0 0.0
    %295 = vmatpush1.msra.mxu0 0.0
    %296 = vmatprep.subr.mxu0 0.0
    %297 = vmatpush1.msra.mxu0 0.0
    %298 = vmatprep.subr.mxu0 0.0
    %299 = vmatpush1.msra.mxu0 0.0
    %300 = vmatprep.subr.mxu0 0.0
    %301 = vmatpush1.msra.mxu0 0.0
    %302 = vmatprep.subr.mxu0 0.0
    %303 = vmatpush1.msra.mxu0 0.0
    %304 = vmatprep.subr.mxu0 0.0
    %305 = vmatpush1.msra.mxu0 0.0
    %306 = vmatprep.subr.mxu0 0.0
    %307 = vmatpush1.msra.mxu0 0.0
    %308 = vmatprep.subr.mxu0 0.0
    %309 = vmatpush1.msra.mxu0 0.0
    %310 = vmatprep.subr.mxu0 0.0
    %311 = vmatpush1.msra.mxu0 0.0
    %312 = vmatprep.mubr.f32.mxu0 0.0
    %313 = vmatmul.mubr.f32.gmra.mrb[0].mxu0 %v243
    %v314 = vpop.f32.mrb[0].mxu0
    %v315 = vadd.f32 %v239, %v314
    %v316 = vpop.f32.mrb[0].mxu0
    %317 = vmatprep.mubr.f32.mxu0 0.0
    %318 = vmatmul.mubr.f32.gmra.mrb[0].mxu0 %v246
    %v319 = vpop.f32.mrb[0].mxu0
    %v320 = vadd.f32 %v239, %v319
    %v321 = vpop.f32.mrb[0].mxu0
    %322 = vdwg.mxu0
    %v323 = vld [vmem:[%s8] sm:$0xff]
    %v324 = vld [vmem:[%s8 + $0x8] sm:$0xff]
    %v325 = vld [vmem:[%s9] sm:$0x1]
    %v326 = vld [vmem:[%s10] sm:$0xff]
    %v327 = vld [vmem:[%s10 + $0x8] sm:$0xff]
    %v328 = vld [vmem:[%s10 + $0x10] sm:$0xff]
    %v329 = vld [vmem:[%s10 + $0x18] sm:$0xff]
    %v330 = vld [vmem:[%s11] sm:$0x1]
    %vm331 = vcmask 130048
    %v333 = vsel %vm331, %v230, 0
    %335 = vmatprep.subr.mxu0 0.0
    %336 = vmatpush1.msra.mxu0 %v323
    %337 = vmatprep.subr.mxu0 0.0
    %338 = vmatpush1.msra.mxu0 %v324
    %339 = vmatprep.subr.mxu0 0.0
    %340 = vmatpush1.msra.mxu0 0.0
    %341 = vmatprep.subr.mxu0 0.0
    %342 = vmatpush1.msra.mxu0 0.0
    %343 = vmatprep.subr.mxu0 0.0
    %344 = vmatpush1.msra.mxu0 0.0
    %345 = vmatprep.subr.mxu0 0.0
    %346 = vmatpush1.msra.mxu0 0.0
    %347 = vmatprep.subr.mxu0 0.0
    %348 = vmatpush1.msra.mxu0 0.0
    %349 = vmatprep.subr.mxu0 0.0
    %350 = vmatpush1.msra.mxu0 0.0
    %351 = vmatprep.subr.mxu0 0.0
    %352 = vmatpush1.msra.mxu0 0.0
    %353 = vmatprep.subr.mxu0 0.0
    %354 = vmatpush1.msra.mxu0 0.0
    %355 = vmatprep.subr.mxu0 0.0
    %356 = vmatpush1.msra.mxu0 0.0
    %357 = vmatprep.subr.mxu0 0.0
    %358 = vmatpush1.msra.mxu0 0.0
    %359 = vmatprep.subr.mxu0 0.0
    %360 = vmatpush1.msra.mxu0 0.0
    %361 = vmatprep.subr.mxu0 0.0
    %362 = vmatpush1.msra.mxu0 0.0
    %363 = vmatprep.subr.mxu0 0.0
    %364 = vmatpush1.msra.mxu0 0.0
    %365 = vmatprep.subr.mxu0 0.0
    %366 = vmatpush1.msra.mxu0 0.0
    %367 = vmatprep.subr.mxu0 0.0
    %368 = vmatpush1.msra.mxu0 0.0
    %369 = vmatprep.subr.mxu0 0.0
    %370 = vmatpush1.msra.mxu0 0.0
    %371 = vmatprep.subr.mxu0 0.0
    %372 = vmatpush1.msra.mxu0 0.0
    %373 = vmatprep.subr.mxu0 0.0
    %374 = vmatpush1.msra.mxu0 0.0
    %375 = vmatprep.subr.mxu0 0.0
    %376 = vmatpush1.msra.mxu0 0.0
    %377 = vmatprep.subr.mxu0 0.0
    %378 = vmatpush1.msra.mxu0 0.0
    %379 = vmatprep.subr.mxu0 0.0
    %380 = vmatpush1.msra.mxu0 0.0
    %381 = vmatprep.subr.mxu0 0.0
    %382 = vmatpush1.msra.mxu0 0.0
    %383 = vmatprep.subr.mxu0 0.0
    %384 = vmatpush1.msra.mxu0 0.0
    %385 = vmatprep.subr.mxu0 0.0
    %386 = vmatpush1.msra.mxu0 0.0
    %387 = vmatprep.subr.mxu0 0.0
    %388 = vmatpush1.msra.mxu0 0.0
    %389 = vmatprep.subr.mxu0 0.0
    %390 = vmatpush1.msra.mxu0 0.0
    %391 = vmatprep.subr.mxu0 0.0
    %392 = vmatpush1.msra.mxu0 0.0
    %393 = vmatprep.subr.mxu0 0.0
    %394 = vmatpush1.msra.mxu0 0.0
    %395 = vmatprep.subr.mxu0 0.0
    %396 = vmatpush1.msra.mxu0 0.0
    %397 = vmatprep.subr.mxu0 0.0
    %398 = vmatpush1.msra.mxu0 0.0
    %399 = vmatprep.mubr.f32.mxu0 0.0
    %400 = vmatmul.mubr.f32.gmra.mrb[0].mxu0 %v333
    %v401 = vpop.f32.mrb[0].mxu0
    %v402 = vadd.f32 0.0, %v401
    %v403 = vpop.f32.mrb[0].mxu0
    %404 = vdwg.mxu0
    %v406 = vrot.slane %v402, 1
    %v409 = vadd.f32 %v315, %v402
    %v410 = vadd.f32 %v320, %v406
    %v411 = vxor.u32 %v409, 2147483648
    %v412 = vxor.u32 %v410, 2147483648
    %v413 = vmul.f32 %v411, 1.442695
    %v414 = vpow.pop %v413
    %v415 = vmul.f32 %v412, 1.442695
    %v416 = vpow.pop %v415
    %v417 = vadd.f32 %v414, 1.0
    %v418 = vadd.f32 %v416, 1.0
    %v419 = vrcp.pop %v417
    %v420 = vmul.f32 1.0, %v419
    %v421 = vrcp.pop %v418
    %v422 = vmul.f32 1.0, %v421
    %v424 = vlaneseq
    %v425 = vshrl.u32 %v424, 7
    %v426 = vsub.s32 0, %v425
    %v427 = vrot.slane %v325, %v426
    %428 = vrot.lane.b32.xlu0 %v427, 32
    %v429 = vpop.permute.xlu0 %428
    %v431 = vadd.f32 %v402, %v429
    %v433 = vrot.slane %v431, 1
    %434 = vrot.lane.b32.xlu0 %v431, 96
    %v435 = vpop.permute.xlu0 %434
    %436 = vrot.lane.b32.xlu0 %v433, 96
    %v437 = vpop.permute.xlu0 %436
    %v440 = vmul.f32 %v420, %v435
    %v441 = vmul.f32 %v422, %v437
    %444 = vrot.lane.b32.xlu0 %v440, 32
    %v445 = vpop.permute.xlu0 %444
    %446 = vrot.lane.b32.xlu0 %v441, 32
    %v447 = vpop.permute.xlu0 %446
    %v450 = vadd.f32 %v315, %v445
    %v451 = vadd.f32 %v320, %v447
    %v452 = vtanh.pop %v450
    %v453 = vtanh.pop %v451
    %v454 = vsub.f32 1.0, %v420
    %v455 = vsub.f32 1.0, %v422
    %458 = vrot.lane.b32.xlu0 %v452, 112
    %v459 = vpop.permute.xlu0 %458
    %460 = vrot.lane.b32.xlu0 %v453, 112
    %v461 = vpop.permute.xlu0 %460
    %v464 = vmul.f32 %v454, %v459
    %v465 = vmul.f32 %v455, %v461
    %v466 = vrot.slane %v230, 1
    %467 = vrot.lane.b32.xlu0 %v230, 16
    %v468 = vpop.permute.xlu0 %467
    %469 = vrot.lane.b32.xlu0 %v466, 16
    %v470 = vpop.permute.xlu0 %469
    %v473 = vmul.f32 %v420, %v468
    %v474 = vmul.f32 %v422, %v470
    %v475 = vadd.f32 %v464, %v473
    %v476 = vadd.f32 %v465, %v474
    %v479 = vrot.slane %v476, 7
    %vm480 = vcmask 1041409
    %v481 = vsel %vm480, %v479, %v475
    %482 = vrot.lane.b32.xlu0 %v481, 112
    %v483 = vpop.permute.xlu0 %482
    %v485 = vsel %vm331, %v483, %v230
    %v487 = vlaneseq
    %v488 = vshrl.u32 %v487, 7
    %v489 = vsub.s32 0, %v488
    %v490 = vrot.slane %v330, %v489
    %vm492 = vcmask 261120
    %v494 = vsel %vm492, %v485, 0
    %496 = vmatprep.subr.mxu0 0.0
    %497 = vmatpush1.msra.mxu0 %v326
    %498 = vmatprep.subr.mxu0 0.0
    %499 = vmatpush1.msra.mxu0 %v327
    %500 = vmatprep.subr.mxu0 0.0
    %501 = vmatpush1.msra.mxu0 %v328
    %502 = vmatprep.subr.mxu0 0.0
    %503 = vmatpush1.msra.mxu0 %v329
    %504 = vmatprep.subr.mxu0 0.0
    %505 = vmatpush1.msra.mxu0 0.0
    %506 = vmatprep.subr.mxu0 0.0
    %507 = vmatpush1.msra.mxu0 0.0
    %508 = vmatprep.subr.mxu0 0.0
    %509 = vmatpush1.msra.mxu0 0.0
    %510 = vmatprep.subr.mxu0 0.0
    %511 = vmatpush1.msra.mxu0 0.0
    %512 = vmatprep.subr.mxu0 0.0
    %513 = vmatpush1.msra.mxu0 0.0
    %514 = vmatprep.subr.mxu0 0.0
    %515 = vmatpush1.msra.mxu0 0.0
    %516 = vmatprep.subr.mxu0 0.0
    %517 = vmatpush1.msra.mxu0 0.0
    %518 = vmatprep.subr.mxu0 0.0
    %519 = vmatpush1.msra.mxu0 0.0
    %520 = vmatprep.subr.mxu0 0.0
    %521 = vmatpush1.msra.mxu0 0.0
    %522 = vmatprep.subr.mxu0 0.0
    %523 = vmatpush1.msra.mxu0 0.0
    %524 = vmatprep.subr.mxu0 0.0
    %525 = vmatpush1.msra.mxu0 0.0
    %526 = vmatprep.subr.mxu0 0.0
    %527 = vmatpush1.msra.mxu0 0.0
    %528 = vmatprep.subr.mxu0 0.0
    %529 = vmatpush1.msra.mxu0 0.0
    %530 = vmatprep.subr.mxu0 0.0
    %531 = vmatpush1.msra.mxu0 0.0
    %532 = vmatprep.subr.mxu0 0.0
    %533 = vmatpush1.msra.mxu0 0.0
    %534 = vmatprep.subr.mxu0 0.0
    %535 = vmatpush1.msra.mxu0 0.0
    %536 = vmatprep.subr.mxu0 0.0
    %537 = vmatpush1.msra.mxu0 0.0
    %538 = vmatprep.subr.mxu0 0.0
    %539 = vmatpush1.msra.mxu0 0.0
    %540 = vmatprep.subr.mxu0 0.0
    %541 = vmatpush1.msra.mxu0 0.0
    %542 = vmatprep.subr.mxu0 0.0
    %543 = vmatpush1.msra.mxu0 0.0
    %544 = vmatprep.subr.mxu0 0.0
    %545 = vmatpush1.msra.mxu0 0.0
    %546 = vmatprep.subr.mxu0 0.0
    %547 = vmatpush1.msra.mxu0 0.0
    %548 = vmatprep.subr.mxu0 0.0
    %549 = vmatpush1.msra.mxu0 0.0
    %550 = vmatprep.subr.mxu0 0.0
    %551 = vmatpush1.msra.mxu0 0.0
    %552 = vmatprep.subr.mxu0 0.0
    %553 = vmatpush1.msra.mxu0 0.0
    %554 = vmatprep.subr.mxu0 0.0
    %555 = vmatpush1.msra.mxu0 0.0
    %556 = vmatprep.subr.mxu0 0.0
    %557 = vmatpush1.msra.mxu0 0.0
    %558 = vmatprep.subr.mxu0 0.0
    %559 = vmatpush1.msra.mxu0 0.0
    %560 = vmatprep.mubr.f32.mxu0 0.0
    %561 = vmatmul.mubr.f32.gmra.mrb[0].mxu0 %v494
    %v562 = vpop.f32.mrb[0].mxu0
    %v563 = vadd.f32 %v490, %v562
    %v564 = vpop.f32.mrb[0].mxu0
    %565 = vdwg.mxu0
    %v566 = vxor.u32 %v563, 2147483648
    %v567 = vmul.f32 %v566, 1.442695
    %v568 = vpow.pop %v567
    %v569 = vadd.f32 %v568, 1.0
    %v570 = vrcp.pop %v569
    %v571 = vmul.f32 1.0, %v570
    %573 = vrot.lane.b32.xlu0 %v563, 80
    %v574 = vpop.permute.xlu0 %573
    %v576 = vmul.f32 %v571, %v574
    %578 = vrot.lane.b32.xlu0 %v576, 32
    %v579 = vpop.permute.xlu0 %578
    %v581 = vadd.f32 %v563, %v579
    %v582 = vtanh.pop %v581
    %v583 = vsub.f32 1.0, %v571
    %585 = vrot.lane.b32.xlu0 %v582, 112
    %v586 = vpop.permute.xlu0 %585
    %v588 = vmul.f32 %v583, %v586
    %v589 = vmul.f32 %v571, %v230
    %v590 = vadd.f32 %v588, %v589
    %v591 = vsel %vm331, %v483, 0
    %593 = vmatprep.subr.mxu0 0.0
    %594 = vmatpush1.msra.mxu0 %v323
    %595 = vmatprep.subr.mxu0 0.0
    %596 = vmatpush1.msra.mxu0 %v324
    %597 = vmatprep.subr.mxu0 0.0
    %598 = vmatpush1.msra.mxu0 0.0
    %599 = vmatprep.subr.mxu0 0.0
    %600 = vmatpush1.msra.mxu0 0.0
    %601 = vmatprep.subr.mxu0 0.0
    %602 = vmatpush1.msra.mxu0 0.0
    %603 = vmatprep.subr.mxu0 0.0
    %604 = vmatpush1.msra.mxu0 0.0
    %605 = vmatprep.subr.mxu0 0.0
    %606 = vmatpush1.msra.mxu0 0.0
    %607 = vmatprep.subr.mxu0 0.0
    %608 = vmatpush1.msra.mxu0 0.0
    %609 = vmatprep.subr.mxu0 0.0
    %610 = vmatpush1.msra.mxu0 0.0
    %611 = vmatprep.subr.mxu0 0.0
    %612 = vmatpush1.msra.mxu0 0.0
    %613 = vmatprep.subr.mxu0 0.0
    %614 = vmatpush1.msra.mxu0 0.0
    %615 = vmatprep.subr.mxu0 0.0
    %616 = vmatpush1.msra.mxu0 0.0
    %617 = vmatprep.subr.mxu0 0.0
    %618 = vmatpush1.msra.mxu0 0.0
    %619 = vmatprep.subr.mxu0 0.0
    %620 = vmatpush1.msra.mxu0 0.0
    %621 = vmatprep.subr.mxu0 0.0
    %622 = vmatpush1.msra.mxu0 0.0
    %623 = vmatprep.subr.mxu0 0.0
    %624 = vmatpush1.msra.mxu0 0.0
    %625 = vmatprep.subr.mxu0 0.0
    %626 = vmatpush1.msra.mxu0 0.0
    %627 = vmatprep.subr.mxu0 0.0
    %628 = vmatpush1.msra.mxu0 0.0
    %629 = vmatprep.subr.mxu0 0.0
    %630 = vmatpush1.msra.mxu0 0.0
    %631 = vmatprep.subr.mxu0 0.0
    %632 = vmatpush1.msra.mxu0 0.0
    %633 = vmatprep.subr.mxu0 0.0
    %634 = vmatpush1.msra.mxu0 0.0
    %635 = vmatprep.subr.mxu0 0.0
    %636 = vmatpush1.msra.mxu0 0.0
    %637 = vmatprep.subr.mxu0 0.0
    %638 = vmatpush1.msra.mxu0 0.0
    %639 = vmatprep.subr.mxu0 0.0
    %640 = vmatpush1.msra.mxu0 0.0
    %641 = vmatprep.subr.mxu0 0.0
    %642 = vmatpush1.msra.mxu0 0.0
    %643 = vmatprep.subr.mxu0 0.0
    %644 = vmatpush1.msra.mxu0 0.0
    %645 = vmatprep.subr.mxu0 0.0
    %646 = vmatpush1.msra.mxu0 0.0
    %647 = vmatprep.subr.mxu0 0.0
    %648 = vmatpush1.msra.mxu0 0.0
    %649 = vmatprep.subr.mxu0 0.0
    %650 = vmatpush1.msra.mxu0 0.0
    %651 = vmatprep.subr.mxu0 0.0
    %652 = vmatpush1.msra.mxu0 0.0
    %653 = vmatprep.subr.mxu0 0.0
    %654 = vmatpush1.msra.mxu0 0.0
    %655 = vmatprep.subr.mxu0 0.0
    %656 = vmatpush1.msra.mxu0 0.0
    %657 = vmatprep.mubr.f32.mxu0 0.0
    %658 = vmatmul.mubr.f32.gmra.mrb[0].mxu0 %v591
    %v659 = vpop.f32.mrb[0].mxu0
    %v660 = vadd.f32 0.0, %v659
    %v661 = vpop.f32.mrb[0].mxu0
    %662 = vdwg.mxu0
    %v664 = vrot.slane %v660, 7
    %v667 = vadd.f32 %v315, %v664
    %v668 = vadd.f32 %v320, %v660
    %v669 = vxor.u32 %v667, 2147483648
    %v670 = vxor.u32 %v668, 2147483648
    %v671 = vmul.f32 %v669, 1.442695
    %v672 = vpow.pop %v671
    %v673 = vmul.f32 %v670, 1.442695
    %v674 = vpow.pop %v673
    %v675 = vadd.f32 %v672, 1.0
    %v676 = vadd.f32 %v674, 1.0
    %v677 = vrcp.pop %v675
    %v678 = vmul.f32 1.0, %v677
    %v679 = vrcp.pop %v676
    %v680 = vmul.f32 1.0, %v679
    %v681 = vadd.f32 %v660, %v429
    %v683 = vrot.slane %v681, 7
    %684 = vrot.lane.b32.xlu0 %v683, 96
    %v685 = vpop.permute.xlu0 %684
    %686 = vrot.lane.b32.xlu0 %v681, 96
    %v687 = vpop.permute.xlu0 %686
    %v690 = vmul.f32 %v678, %v685
    %v691 = vmul.f32 %v680, %v687
    %694 = vrot.lane.b32.xlu0 %v690, 32
    %v695 = vpop.permute.xlu0 %694
    %696 = vrot.lane.b32.xlu0 %v691, 32
    %v697 = vpop.permute.xlu0 %696
    %v700 = vadd.f32 %v315, %v695
    %v701 = vadd.f32 %v320, %v697
    %v702 = vtanh.pop %v700
    %v703 = vtanh.pop %v701
    %v704 = vsub.f32 1.0, %v678
    %v705 = vsub.f32 1.0, %v680
    %708 = vrot.lane.b32.xlu0 %v702, 112
    %v709 = vpop.permute.xlu0 %708
    %710 = vrot.lane.b32.xlu0 %v703, 112
    %v711 = vpop.permute.xlu0 %710
    %v714 = vmul.f32 %v704, %v709
    %v715 = vmul.f32 %v705, %v711
    %v716 = vrot.slane %v475, 7
    %v719 = vmul.f32 %v678, %v716
    %v720 = vmul.f32 %v680, %v479
    %v721 = vadd.f32 %v714, %v719
    %v722 = vadd.f32 %v715, %v720
    %v725 = vrot.slane %v722, 7
    %vm726 = vcmask 1042434
    %v727 = vsel %vm726, %v725, %v721
    %728 = vrot.lane.b32.xlu0 %v727, 112
    %v729 = vpop.permute.xlu0 %728
    %v732 = vrot.slane %v590, 7
    %v734 = vsel %vm331, %v729, %v732
    %v736 = vrot.slane %v734, 1
    %v737 = vsel %vm492, %v736, 0
    %739 = vmatprep.subr.mxu0 0.0
    %740 = vmatpush1.msra.mxu0 %v326
    %741 = vmatprep.subr.mxu0 0.0
    %742 = vmatpush1.msra.mxu0 %v327
    %743 = vmatprep.subr.mxu0 0.0
    %744 = vmatpush1.msra.mxu0 %v328
    %745 = vmatprep.subr.mxu0 0.0
    %746 = vmatpush1.msra.mxu0 %v329
    %747 = vmatprep.subr.mxu0 0.0
    %748 = vmatpush1.msra.mxu0 0.0
    %749 = vmatprep.subr.mxu0 0.0
    %750 = vmatpush1.msra.mxu0 0.0
    %751 = vmatprep.subr.mxu0 0.0
    %752 = vmatpush1.msra.mxu0 0.0
    %753 = vmatprep.subr.mxu0 0.0
    %754 = vmatpush1.msra.mxu0 0.0
    %755 = vmatprep.subr.mxu0 0.0
    %756 = vmatpush1.msra.mxu0 0.0
    %757 = vmatprep.subr.mxu0 0.0
    %758 = vmatpush1.msra.mxu0 0.0
    %759 = vmatprep.subr.mxu0 0.0
    %760 = vmatpush1.msra.mxu0 0.0
    %761 = vmatprep.subr.mxu0 0.0
    %762 = vmatpush1.msra.mxu0 0.0
    %763 = vmatprep.subr.mxu0 0.0
    %764 = vmatpush1.msra.mxu0 0.0
    %765 = vmatprep.subr.mxu0 0.0
    %766 = vmatpush1.msra.mxu0 0.0
    %767 = vmatprep.subr.mxu0 0.0
    %768 = vmatpush1.msra.mxu0 0.0
    %769 = vmatprep.subr.mxu0 0.0
    %770 = vmatpush1.msra.mxu0 0.0
    %771 = vmatprep.subr.mxu0 0.0
    %772 = vmatpush1.msra.mxu0 0.0
    %773 = vmatprep.subr.mxu0 0.0
    %774 = vmatpush1.msra.mxu0 0.0
    %775 = vmatprep.subr.mxu0 0.0
    %776 = vmatpush1.msra.mxu0 0.0
    %777 = vmatprep.subr.mxu0 0.0
    %778 = vmatpush1.msra.mxu0 0.0
    %779 = vmatprep.subr.mxu0 0.0
    %780 = vmatpush1.msra.mxu0 0.0
    %781 = vmatprep.subr.mxu0 0.0
    %782 = vmatpush1.msra.mxu0 0.0
    %783 = vmatprep.subr.mxu0 0.0
    %784 = vmatpush1.msra.mxu0 0.0
    %785 = vmatprep.subr.mxu0 0.0
    %786 = vmatpush1.msra.mxu0 0.0
    %787 = vmatprep.subr.mxu0 0.0
    %788 = vmatpush1.msra.mxu0 0.0
    %789 = vmatprep.subr.mxu0 0.0
    %790 = vmatpush1.msra.mxu0 0.0
    %791 = vmatprep.subr.mxu0 0.0
    %792 = vmatpush1.msra.mxu0 0.0
    %793 = vmatprep.subr.mxu0 0.0
    %794 = vmatpush1.msra.mxu0 0.0
    %795 = vmatprep.subr.mxu0 0.0
    %796 = vmatpush1.msra.mxu0 0.0
    %797 = vmatprep.subr.mxu0 0.0
    %798 = vmatpush1.msra.mxu0 0.0
    %799 = vmatprep.subr.mxu0 0.0
    %800 = vmatpush1.msra.mxu0 0.0
    %801 = vmatprep.subr.mxu0 0.0
    %802 = vmatpush1.msra.mxu0 0.0
    %803 = vmatprep.mubr.f32.mxu0 0.0
    %804 = vmatmul.mubr.f32.gmra.mrb[0].mxu0 %v737
    %v805 = vpop.f32.mrb[0].mxu0
    %v806 = vadd.f32 %v490, %v805
    %v807 = vpop.f32.mrb[0].mxu0
    %808 = vdwg.mxu0
    %v809 = vxor.u32 %v806, 2147483648
    %v810 = vmul.f32 %v809, 1.442695
    %v811 = vpow.pop %v810
    %v812 = vadd.f32 %v811, 1.0
    %v813 = vrcp.pop %v812
    %v814 = vmul.f32 1.0, %v813
    %816 = vrot.lane.b32.xlu0 %v806, 80
    %v817 = vpop.permute.xlu0 %816
    %v819 = vmul.f32 %v814, %v817
    %821 = vrot.lane.b32.xlu0 %v819, 32
    %v822 = vpop.permute.xlu0 %821
    %v824 = vadd.f32 %v806, %v822
    %v825 = vtanh.pop %v824
    %v826 = vsub.f32 1.0, %v814
    %828 = vrot.lane.b32.xlu0 %v825, 112
    %v829 = vpop.permute.xlu0 %828
    %v831 = vmul.f32 %v826, %v829
    %v832 = vmul.f32 %v814, %v590
    %v833 = vadd.f32 %v831, %v832
    %v834 = vrot.slane %v721, 1
    %v835 = vsel %vm480, %v722, %v834
    %836 = vrot.lane.b32.xlu0 %v835, 112
    %v837 = vpop.permute.xlu0 %836
    %v838 = vsel %vm331, %v837, 0
    %840 = vmatprep.subr.mxu0 0.0
    %841 = vmatpush1.msra.mxu0 %v323
    %842 = vmatprep.subr.mxu0 0.0
    %843 = vmatpush1.msra.mxu0 %v324
    %844 = vmatprep.subr.mxu0 0.0
    %845 = vmatpush1.msra.mxu0 0.0
    %846 = vmatprep.subr.mxu0 0.0
    %847 = vmatpush1.msra.mxu0 0.0
    %848 = vmatprep.subr.mxu0 0.0
    %849 = vmatpush1.msra.mxu0 0.0
    %850 = vmatprep.subr.mxu0 0.0
    %851 = vmatpush1.msra.mxu0 0.0
    %852 = vmatprep.subr.mxu0 0.0
    %853 = vmatpush1.msra.mxu0 0.0
    %854 = vmatprep.subr.mxu0 0.0
    %855 = vmatpush1.msra.mxu0 0.0
    %856 = vmatprep.subr.mxu0 0.0
    %857 = vmatpush1.msra.mxu0 0.0
    %858 = vmatprep.subr.mxu0 0.0
    %859 = vmatpush1.msra.mxu0 0.0
    %860 = vmatprep.subr.mxu0 0.0
    %861 = vmatpush1.msra.mxu0 0.0
    %862 = vmatprep.subr.mxu0 0.0
    %863 = vmatpush1.msra.mxu0 0.0
    %864 = vmatprep.subr.mxu0 0.0
    %865 = vmatpush1.msra.mxu0 0.0
    %866 = vmatprep.subr.mxu0 0.0
    %867 = vmatpush1.msra.mxu0 0.0
    %868 = vmatprep.subr.mxu0 0.0
    %869 = vmatpush1.msra.mxu0 0.0
    %870 = vmatprep.subr.mxu0 0.0
    %871 = vmatpush1.msra.mxu0 0.0
    %872 = vmatprep.subr.mxu0 0.0
    %873 = vmatpush1.msra.mxu0 0.0
    %874 = vmatprep.subr.mxu0 0.0
    %875 = vmatpush1.msra.mxu0 0.0
    %876 = vmatprep.subr.mxu0 0.0
    %877 = vmatpush1.msra.mxu0 0.0
    %878 = vmatprep.subr.mxu0 0.0
    %879 = vmatpush1.msra.mxu0 0.0
    %880 = vmatprep.subr.mxu0 0.0
    %881 = vmatpush1.msra.mxu0 0.0
    %882 = vmatprep.subr.mxu0 0.0
    %883 = vmatpush1.msra.mxu0 0.0
    %884 = vmatprep.subr.mxu0 0.0
    %885 = vmatpush1.msra.mxu0 0.0
    %886 = vmatprep.subr.mxu0 0.0
    %887 = vmatpush1.msra.mxu0 0.0
    %888 = vmatprep.subr.mxu0 0.0
    %889 = vmatpush1.msra.mxu0 0.0
    %890 = vmatprep.subr.mxu0 0.0
    %891 = vmatpush1.msra.mxu0 0.0
    %892 = vmatprep.subr.mxu0 0.0
    %893 = vmatpush1.msra.mxu0 0.0
    %894 = vmatprep.subr.mxu0 0.0
    %895 = vmatpush1.msra.mxu0 0.0
    %896 = vmatprep.subr.mxu0 0.0
    %897 = vmatpush1.msra.mxu0 0.0
    %898 = vmatprep.subr.mxu0 0.0
    %899 = vmatpush1.msra.mxu0 0.0
    %900 = vmatprep.subr.mxu0 0.0
    %901 = vmatpush1.msra.mxu0 0.0
    %902 = vmatprep.subr.mxu0 0.0
    %903 = vmatpush1.msra.mxu0 0.0
    %904 = vmatprep.mubr.f32.mxu0 0.0
    %905 = vmatmul.mubr.f32.gmra.mrb[0].mxu0 %v838
    %v906 = vpop.f32.mrb[0].mxu0
    %v907 = vadd.f32 0.0, %v906
    %v908 = vpop.f32.mrb[0].mxu0
    %909 = vdwg.mxu0
    %v911 = vrot.slane %v907, 6
    %v912 = vrot.slane %v907, 7
    %v915 = vadd.f32 %v315, %v911
    %v916 = vadd.f32 %v320, %v912
    %v917 = vxor.u32 %v915, 2147483648
    %v918 = vxor.u32 %v916, 2147483648
    %v919 = vmul.f32 %v917, 1.442695
    %v920 = vpow.pop %v919
    %v921 = vmul.f32 %v918, 1.442695
    %v922 = vpow.pop %v921
    %v923 = vadd.f32 %v920, 1.0
    %v924 = vadd.f32 %v922, 1.0
    %v925 = vrcp.pop %v923
    %v926 = vmul.f32 1.0, %v925
    %v927 = vrcp.pop %v924
    %v928 = vmul.f32 1.0, %v927
    %v929 = vadd.f32 %v907, %v429
    %v931 = vrot.slane %v929, 6
    %v932 = vrot.slane %v929, 7
    %933 = vrot.lane.b32.xlu0 %v931, 96
    %v934 = vpop.permute.xlu0 %933
    %935 = vrot.lane.b32.xlu0 %v932, 96
    %v936 = vpop.permute.xlu0 %935
    %v939 = vmul.f32 %v926, %v934
    %v940 = vmul.f32 %v928, %v936
    %943 = vrot.lane.b32.xlu0 %v939, 32
    %v944 = vpop.permute.xlu0 %943
    %945 = vrot.lane.b32.xlu0 %v940, 32
    %v946 = vpop.permute.xlu0 %945
    %v949 = vadd.f32 %v315, %v944
    %v950 = vadd.f32 %v320, %v946
    %v951 = vtanh.pop %v949
    %v952 = vtanh.pop %v950
    %v953 = vsub.f32 1.0, %v926
    %v954 = vsub.f32 1.0, %v928
    %957 = vrot.lane.b32.xlu0 %v951, 112
    %v958 = vpop.permute.xlu0 %957
    %959 = vrot.lane.b32.xlu0 %v952, 112
    %v960 = vpop.permute.xlu0 %959
    %v963 = vmul.f32 %v953, %v958
    %v964 = vmul.f32 %v954, %v960
    %v965 = vrot.slane %v721, 7
    %v968 = vmul.f32 %v926, %v965
    %v969 = vmul.f32 %v928, %v725
    %v970 = vadd.f32 %v963, %v968
    %v971 = vadd.f32 %v964, %v969
    %v974 = vrot.slane %v971, 7
    %vm975 = vcmask 1043459
    %v976 = vsel %vm975, %v974, %v970
    %977 = vrot.lane.b32.xlu0 %v976, 112
    %v978 = vpop.permute.xlu0 %977
    %v981 = vrot.slane %v833, 6
    %v983 = vsel %vm331, %v978, %v981
    %v985 = vrot.slane %v983, 2
    %v986 = vsel %vm492, %v985, 0
    %988 = vmatprep.subr.mxu0 0.0
    %989 = vmatpush1.msra.mxu0 %v326
    %990 = vmatprep.subr.mxu0 0.0
    %991 = vmatpush1.msra.mxu0 %v327
    %992 = vmatprep.subr.mxu0 0.0
    %993 = vmatpush1.msra.mxu0 %v328
    %994 = vmatprep.subr.mxu0 0.0
    %995 = vmatpush1.msra.mxu0 %v329
    %996 = vmatprep.subr.mxu0 0.0
    %997 = vmatpush1.msra.mxu0 0.0
    %998 = vmatprep.subr.mxu0 0.0
    %999 = vmatpush1.msra.mxu0 0.0
    %1000 = vmatprep.subr.mxu0 0.0
    %1001 = vmatpush1.msra.mxu0 0.0
    %1002 = vmatprep.subr.mxu0 0.0
    %1003 = vmatpush1.msra.mxu0 0.0
    %1004 = vmatprep.subr.mxu0 0.0
    %1005 = vmatpush1.msra.mxu0 0.0
    %1006 = vmatprep.subr.mxu0 0.0
    %1007 = vmatpush1.msra.mxu0 0.0
    %1008 = vmatprep.subr.mxu0 0.0
    %1009 = vmatpush1.msra.mxu0 0.0
    %1010 = vmatprep.subr.mxu0 0.0
    %1011 = vmatpush1.msra.mxu0 0.0
    %1012 = vmatprep.subr.mxu0 0.0
    %1013 = vmatpush1.msra.mxu0 0.0
    %1014 = vmatprep.subr.mxu0 0.0
    %1015 = vmatpush1.msra.mxu0 0.0
    %1016 = vmatprep.subr.mxu0 0.0
    %1017 = vmatpush1.msra.mxu0 0.0
    %1018 = vmatprep.subr.mxu0 0.0
    %1019 = vmatpush1.msra.mxu0 0.0
    %1020 = vmatprep.subr.mxu0 0.0
    %1021 = vmatpush1.msra.mxu0 0.0
    %1022 = vmatprep.subr.mxu0 0.0
    %1023 = vmatpush1.msra.mxu0 0.0
    %1024 = vmatprep.subr.mxu0 0.0
    %1025 = vmatpush1.msra.mxu0 0.0
    %1026 = vmatprep.subr.mxu0 0.0
    %1027 = vmatpush1.msra.mxu0 0.0
    %1028 = vmatprep.subr.mxu0 0.0
    %1029 = vmatpush1.msra.mxu0 0.0
    %1030 = vmatprep.subr.mxu0 0.0
    %1031 = vmatpush1.msra.mxu0 0.0
    %1032 = vmatprep.subr.mxu0 0.0
    %1033 = vmatpush1.msra.mxu0 0.0
    %1034 = vmatprep.subr.mxu0 0.0
    %1035 = vmatpush1.msra.mxu0 0.0
    %1036 = vmatprep.subr.mxu0 0.0
    %1037 = vmatpush1.msra.mxu0 0.0
    %1038 = vmatprep.subr.mxu0 0.0
    %1039 = vmatpush1.msra.mxu0 0.0
    %1040 = vmatprep.subr.mxu0 0.0
    %1041 = vmatpush1.msra.mxu0 0.0
    %1042 = vmatprep.subr.mxu0 0.0
    %1043 = vmatpush1.msra.mxu0 0.0
    %1044 = vmatprep.subr.mxu0 0.0
    %1045 = vmatpush1.msra.mxu0 0.0
    %1046 = vmatprep.subr.mxu0 0.0
    %1047 = vmatpush1.msra.mxu0 0.0
    %1048 = vmatprep.subr.mxu0 0.0
    %1049 = vmatpush1.msra.mxu0 0.0
    %1050 = vmatprep.subr.mxu0 0.0
    %1051 = vmatpush1.msra.mxu0 0.0
    %1052 = vmatprep.mubr.f32.mxu0 0.0
    %1053 = vmatmul.mubr.f32.gmra.mrb[0].mxu0 %v986
    %v1054 = vpop.f32.mrb[0].mxu0
    %v1055 = vadd.f32 %v490, %v1054
    %v1056 = vpop.f32.mrb[0].mxu0
    %1057 = vdwg.mxu0
    %v1058 = vxor.u32 %v1055, 2147483648
    %v1059 = vmul.f32 %v1058, 1.442695
    %v1060 = vpow.pop %v1059
    %v1061 = vadd.f32 %v1060, 1.0
    %v1062 = vrcp.pop %v1061
    %v1063 = vmul.f32 1.0, %v1062
    %1065 = vrot.lane.b32.xlu0 %v1055, 80
    %v1066 = vpop.permute.xlu0 %1065
    %v1068 = vmul.f32 %v1063, %v1066
    %1070 = vrot.lane.b32.xlu0 %v1068, 32
    %v1071 = vpop.permute.xlu0 %1070
    %v1073 = vadd.f32 %v1055, %v1071
    %v1074 = vtanh.pop %v1073
    %v1075 = vsub.f32 1.0, %v1063
    %1077 = vrot.lane.b32.xlu0 %v1074, 112
    %v1078 = vpop.permute.xlu0 %1077
    %v1080 = vmul.f32 %v1075, %v1078
    %v1081 = vmul.f32 %v1063, %v833
    %v1082 = vadd.f32 %v1080, %v1081
    %v1083 = vrot.slane %v970, 2
    %v1084 = vrot.slane %v971, 1
    %v1085 = vsel %vm480, %v1084, %v1083
    %1086 = vrot.lane.b32.xlu0 %v1085, 112
    %v1087 = vpop.permute.xlu0 %1086
    %v1088 = vsel %vm331, %v1087, 0
    %1090 = vmatprep.subr.mxu0 0.0
    %1091 = vmatpush1.msra.mxu0 %v323
    %1092 = vmatprep.subr.mxu0 0.0
    %1093 = vmatpush1.msra.mxu0 %v324
    %1094 = vmatprep.subr.mxu0 0.0
    %1095 = vmatpush1.msra.mxu0 0.0
    %1096 = vmatprep.subr.mxu0 0.0
    %1097 = vmatpush1.msra.mxu0 0.0
    %1098 = vmatprep.subr.mxu0 0.0
    %1099 = vmatpush1.msra.mxu0 0.0
    %1100 = vmatprep.subr.mxu0 0.0
    %1101 = vmatpush1.msra.mxu0 0.0
    %1102 = vmatprep.subr.mxu0 0.0
    %1103 = vmatpush1.msra.mxu0 0.0
    %1104 = vmatprep.subr.mxu0 0.0
    %1105 = vmatpush1.msra.mxu0 0.0
    %1106 = vmatprep.subr.mxu0 0.0
    %1107 = vmatpush1.msra.mxu0 0.0
    %1108 = vmatprep.subr.mxu0 0.0
    %1109 = vmatpush1.msra.mxu0 0.0
    %1110 = vmatprep.subr.mxu0 0.0
    %1111 = vmatpush1.msra.mxu0 0.0
    %1112 = vmatprep.subr.mxu0 0.0
    %1113 = vmatpush1.msra.mxu0 0.0
    %1114 = vmatprep.subr.mxu0 0.0
    %1115 = vmatpush1.msra.mxu0 0.0
    %1116 = vmatprep.subr.mxu0 0.0
    %1117 = vmatpush1.msra.mxu0 0.0
    %1118 = vmatprep.subr.mxu0 0.0
    %1119 = vmatpush1.msra.mxu0 0.0
    %1120 = vmatprep.subr.mxu0 0.0
    %1121 = vmatpush1.msra.mxu0 0.0
    %1122 = vmatprep.subr.mxu0 0.0
    %1123 = vmatpush1.msra.mxu0 0.0
    %1124 = vmatprep.subr.mxu0 0.0
    %1125 = vmatpush1.msra.mxu0 0.0
    %1126 = vmatprep.subr.mxu0 0.0
    %1127 = vmatpush1.msra.mxu0 0.0
    %1128 = vmatprep.subr.mxu0 0.0
    %1129 = vmatpush1.msra.mxu0 0.0
    %1130 = vmatprep.subr.mxu0 0.0
    %1131 = vmatpush1.msra.mxu0 0.0
    %1132 = vmatprep.subr.mxu0 0.0
    %1133 = vmatpush1.msra.mxu0 0.0
    %1134 = vmatprep.subr.mxu0 0.0
    %1135 = vmatpush1.msra.mxu0 0.0
    %1136 = vmatprep.subr.mxu0 0.0
    %1137 = vmatpush1.msra.mxu0 0.0
    %1138 = vmatprep.subr.mxu0 0.0
    %1139 = vmatpush1.msra.mxu0 0.0
    %1140 = vmatprep.subr.mxu0 0.0
    %1141 = vmatpush1.msra.mxu0 0.0
    %1142 = vmatprep.subr.mxu0 0.0
    %1143 = vmatpush1.msra.mxu0 0.0
    %1144 = vmatprep.subr.mxu0 0.0
    %1145 = vmatpush1.msra.mxu0 0.0
    %1146 = vmatprep.subr.mxu0 0.0
    %1147 = vmatpush1.msra.mxu0 0.0
    %1148 = vmatprep.subr.mxu0 0.0
    %1149 = vmatpush1.msra.mxu0 0.0
    %1150 = vmatprep.subr.mxu0 0.0
    %1151 = vmatpush1.msra.mxu0 0.0
    %1152 = vmatprep.subr.mxu0 0.0
    %1153 = vmatpush1.msra.mxu0 0.0
    %1154 = vmatprep.mubr.f32.mxu0 0.0
    %1155 = vmatmul.mubr.f32.gmra.mrb[0].mxu0 %v1088
    %v1156 = vpop.f32.mrb[0].mxu0
    %v1157 = vadd.f32 0.0, %v1156
    %v1158 = vpop.f32.mrb[0].mxu0
    %1159 = vdwg.mxu0
    %v1161 = vrot.slane %v1157, 5
    %v1162 = vrot.slane %v1157, 6
    %v1165 = vadd.f32 %v315, %v1161
    %v1166 = vadd.f32 %v320, %v1162
    %v1167 = vxor.u32 %v1165, 2147483648
    %v1168 = vxor.u32 %v1166, 2147483648
    %v1169 = vmul.f32 %v1167, 1.442695
    %v1170 = vpow.pop %v1169
    %v1171 = vmul.f32 %v1168, 1.442695
    %v1172 = vpow.pop %v1171
    %v1173 = vadd.f32 %v1170, 1.0
    %v1174 = vadd.f32 %v1172, 1.0
    %v1175 = vrcp.pop %v1173
    %v1176 = vmul.f32 1.0, %v1175
    %v1177 = vrcp.pop %v1174
    %v1178 = vmul.f32 1.0, %v1177
    %v1179 = vadd.f32 %v1157, %v429
    %v1181 = vrot.slane %v1179, 5
    %v1182 = vrot.slane %v1179, 6
    %1183 = vrot.lane.b32.xlu0 %v1181, 96
    %v1184 = vpop.permute.xlu0 %1183
    %1185 = vrot.lane.b32.xlu0 %v1182, 96
    %v1186 = vpop.permute.xlu0 %1185
    %v1189 = vmul.f32 %v1176, %v1184
    %v1190 = vmul.f32 %v1178, %v1186
    %1193 = vrot.lane.b32.xlu0 %v1189, 32
    %v1194 = vpop.permute.xlu0 %1193
    %1195 = vrot.lane.b32.xlu0 %v1190, 32
    %v1196 = vpop.permute.xlu0 %1195
    %v1199 = vadd.f32 %v315, %v1194
    %v1200 = vadd.f32 %v320, %v1196
    %v1201 = vtanh.pop %v1199
    %v1202 = vtanh.pop %v1200
    %v1203 = vsub.f32 1.0, %v1176
    %v1204 = vsub.f32 1.0, %v1178
    %1207 = vrot.lane.b32.xlu0 %v1201, 112
    %v1208 = vpop.permute.xlu0 %1207
    %1209 = vrot.lane.b32.xlu0 %v1202, 112
    %v1210 = vpop.permute.xlu0 %1209
    %v1213 = vmul.f32 %v1203, %v1208
    %v1214 = vmul.f32 %v1204, %v1210
    %v1215 = vrot.slane %v970, 7
    %v1218 = vmul.f32 %v1176, %v1215
    %v1219 = vmul.f32 %v1178, %v974
    %v1220 = vadd.f32 %v1213, %v1218
    %v1221 = vadd.f32 %v1214, %v1219
    %v1224 = vrot.slane %v1221, 7
    %vm1225 = vcmask 1044484
    %v1226 = vsel %vm1225, %v1224, %v1220
    %1227 = vrot.lane.b32.xlu0 %v1226, 112
    %v1228 = vpop.permute.xlu0 %1227
    %v1231 = vrot.slane %v1082, 5
    %v1233 = vsel %vm331, %v1228, %v1231
    %v1235 = vrot.slane %v1233, 3
    %v1236 = vsel %vm492, %v1235, 0
    %1238 = vmatprep.subr.mxu0 0.0
    %1239 = vmatpush1.msra.mxu0 %v326
    %1240 = vmatprep.subr.mxu0 0.0
    %1241 = vmatpush1.msra.mxu0 %v327
    %1242 = vmatprep.subr.mxu0 0.0
    %1243 = vmatpush1.msra.mxu0 %v328
    %1244 = vmatprep.subr.mxu0 0.0
    %1245 = vmatpush1.msra.mxu0 %v329
    %1246 = vmatprep.subr.mxu0 0.0
    %1247 = vmatpush1.msra.mxu0 0.0
    %1248 = vmatprep.subr.mxu0 0.0
    %1249 = vmatpush1.msra.mxu0 0.0
    %1250 = vmatprep.subr.mxu0 0.0
    %1251 = vmatpush1.msra.mxu0 0.0
    %1252 = vmatprep.subr.mxu0 0.0
    %1253 = vmatpush1.msra.mxu0 0.0
    %1254 = vmatprep.subr.mxu0 0.0
    %1255 = vmatpush1.msra.mxu0 0.0
    %1256 = vmatprep.subr.mxu0 0.0
    %1257 = vmatpush1.msra.mxu0 0.0
    %1258 = vmatprep.subr.mxu0 0.0
    %1259 = vmatpush1.msra.mxu0 0.0
    %1260 = vmatprep.subr.mxu0 0.0
    %1261 = vmatpush1.msra.mxu0 0.0
    %1262 = vmatprep.subr.mxu0 0.0
    %1263 = vmatpush1.msra.mxu0 0.0
    %1264 = vmatprep.subr.mxu0 0.0
    %1265 = vmatpush1.msra.mxu0 0.0
    %1266 = vmatprep.subr.mxu0 0.0
    %1267 = vmatpush1.msra.mxu0 0.0
    %1268 = vmatprep.subr.mxu0 0.0
    %1269 = vmatpush1.msra.mxu0 0.0
    %1270 = vmatprep.subr.mxu0 0.0
    %1271 = vmatpush1.msra.mxu0 0.0
    %1272 = vmatprep.subr.mxu0 0.0
    %1273 = vmatpush1.msra.mxu0 0.0
    %1274 = vmatprep.subr.mxu0 0.0
    %1275 = vmatpush1.msra.mxu0 0.0
    %1276 = vmatprep.subr.mxu0 0.0
    %1277 = vmatpush1.msra.mxu0 0.0
    %1278 = vmatprep.subr.mxu0 0.0
    %1279 = vmatpush1.msra.mxu0 0.0
    %1280 = vmatprep.subr.mxu0 0.0
    %1281 = vmatpush1.msra.mxu0 0.0
    %1282 = vmatprep.subr.mxu0 0.0
    %1283 = vmatpush1.msra.mxu0 0.0
    %1284 = vmatprep.subr.mxu0 0.0
    %1285 = vmatpush1.msra.mxu0 0.0
    %1286 = vmatprep.subr.mxu0 0.0
    %1287 = vmatpush1.msra.mxu0 0.0
    %1288 = vmatprep.subr.mxu0 0.0
    %1289 = vmatpush1.msra.mxu0 0.0
    %1290 = vmatprep.subr.mxu0 0.0
    %1291 = vmatpush1.msra.mxu0 0.0
    %1292 = vmatprep.subr.mxu0 0.0
    %1293 = vmatpush1.msra.mxu0 0.0
    %1294 = vmatprep.subr.mxu0 0.0
    %1295 = vmatpush1.msra.mxu0 0.0
    %1296 = vmatprep.subr.mxu0 0.0
    %1297 = vmatpush1.msra.mxu0 0.0
    %1298 = vmatprep.subr.mxu0 0.0
    %1299 = vmatpush1.msra.mxu0 0.0
    %1300 = vmatprep.subr.mxu0 0.0
    %1301 = vmatpush1.msra.mxu0 0.0
    %1302 = vmatprep.mubr.f32.mxu0 0.0
    %1303 = vmatmul.mubr.f32.gmra.mrb[0].mxu0 %v1236
    %v1304 = vpop.f32.mrb[0].mxu0
    %v1305 = vadd.f32 %v490, %v1304
    %v1306 = vpop.f32.mrb[0].mxu0
    %1307 = vdwg.mxu0
    %v1308 = vxor.u32 %v1305, 2147483648
    %v1309 = vmul.f32 %v1308, 1.442695
    %v1310 = vpow.pop %v1309
    %v1311 = vadd.f32 %v1310, 1.0
    %v1312 = vrcp.pop %v1311
    %v1313 = vmul.f32 1.0, %v1312
    %1315 = vrot.lane.b32.xlu0 %v1305, 80
    %v1316 = vpop.permute.xlu0 %1315
    %v1318 = vmul.f32 %v1313, %v1316
    %1320 = vrot.lane.b32.xlu0 %v1318, 32
    %v1321 = vpop.permute.xlu0 %1320
    %v1323 = vadd.f32 %v1305, %v1321
    %v1324 = vtanh.pop %v1323
    %v1325 = vsub.f32 1.0, %v1313
    %1327 = vrot.lane.b32.xlu0 %v1324, 112
    %v1328 = vpop.permute.xlu0 %1327
    %v1330 = vmul.f32 %v1325, %v1328
    %v1331 = vmul.f32 %v1313, %v1082
    %v1332 = vadd.f32 %v1330, %v1331
    %v1333 = vrot.slane %v1220, 3
    %v1334 = vrot.slane %v1221, 2
    %v1335 = vsel %vm480, %v1334, %v1333
    %1336 = vrot.lane.b32.xlu0 %v1335, 112
    %v1337 = vpop.permute.xlu0 %1336
    %v1338 = vsel %vm331, %v1337, 0
    %1340 = vmatprep.subr.mxu0 0.0
    %1341 = vmatpush1.msra.mxu0 %v323
    %1342 = vmatprep.subr.mxu0 0.0
    %1343 = vmatpush1.msra.mxu0 %v324
    %1344 = vmatprep.subr.mxu0 0.0
    %1345 = vmatpush1.msra.mxu0 0.0
    %1346 = vmatprep.subr.mxu0 0.0
    %1347 = vmatpush1.msra.mxu0 0.0
    %1348 = vmatprep.subr.mxu0 0.0
    %1349 = vmatpush1.msra.mxu0 0.0
    %1350 = vmatprep.subr.mxu0 0.0
    %1351 = vmatpush1.msra.mxu0 0.0
    %1352 = vmatprep.subr.mxu0 0.0
    %1353 = vmatpush1.msra.mxu0 0.0
    %1354 = vmatprep.subr.mxu0 0.0
    %1355 = vmatpush1.msra.mxu0 0.0
    %1356 = vmatprep.subr.mxu0 0.0
    %1357 = vmatpush1.msra.mxu0 0.0
    %1358 = vmatprep.subr.mxu0 0.0
    %1359 = vmatpush1.msra.mxu0 0.0
    %1360 = vmatprep.subr.mxu0 0.0
    %1361 = vmatpush1.msra.mxu0 0.0
    %1362 = vmatprep.subr.mxu0 0.0
    %1363 = vmatpush1.msra.mxu0 0.0
    %1364 = vmatprep.subr.mxu0 0.0
    %1365 = vmatpush1.msra.mxu0 0.0
    %1366 = vmatprep.subr.mxu0 0.0
    %1367 = vmatpush1.msra.mxu0 0.0
    %1368 = vmatprep.subr.mxu0 0.0
    %1369 = vmatpush1.msra.mxu0 0.0
    %1370 = vmatprep.subr.mxu0 0.0
    %1371 = vmatpush1.msra.mxu0 0.0
    %1372 = vmatprep.subr.mxu0 0.0
    %1373 = vmatpush1.msra.mxu0 0.0
    %1374 = vmatprep.subr.mxu0 0.0
    %1375 = vmatpush1.msra.mxu0 0.0
    %1376 = vmatprep.subr.mxu0 0.0
    %1377 = vmatpush1.msra.mxu0 0.0
    %1378 = vmatprep.subr.mxu0 0.0
    %1379 = vmatpush1.msra.mxu0 0.0
    %1380 = vmatprep.subr.mxu0 0.0
    %1381 = vmatpush1.msra.mxu0 0.0
    %1382 = vmatprep.subr.mxu0 0.0
    %1383 = vmatpush1.msra.mxu0 0.0
    %1384 = vmatprep.subr.mxu0 0.0
    %1385 = vmatpush1.msra.mxu0 0.0
    %1386 = vmatprep.subr.mxu0 0.0
    %1387 = vmatpush1.msra.mxu0 0.0
    %1388 = vmatprep.subr.mxu0 0.0
    %1389 = vmatpush1.msra.mxu0 0.0
    %1390 = vmatprep.subr.mxu0 0.0
    %1391 = vmatpush1.msra.mxu0 0.0
    %1392 = vmatprep.subr.mxu0 0.0
    %1393 = vmatpush1.msra.mxu0 0.0
    %1394 = vmatprep.subr.mxu0 0.0
    %1395 = vmatpush1.msra.mxu0 0.0
    %1396 = vmatprep.subr.mxu0 0.0
    %1397 = vmatpush1.msra.mxu0 0.0
    %1398 = vmatprep.subr.mxu0 0.0
    %1399 = vmatpush1.msra.mxu0 0.0
    %1400 = vmatprep.subr.mxu0 0.0
    %1401 = vmatpush1.msra.mxu0 0.0
    %1402 = vmatprep.subr.mxu0 0.0
    %1403 = vmatpush1.msra.mxu0 0.0
    %1404 = vmatprep.mubr.f32.mxu0 0.0
    %1405 = vmatmul.mubr.f32.gmra.mrb[0].mxu0 %v1338
    %v1406 = vpop.f32.mrb[0].mxu0
    %v1407 = vadd.f32 0.0, %v1406
    %v1408 = vpop.f32.mrb[0].mxu0
    %1409 = vdwg.mxu0
    %v1411 = vrot.slane %v1407, 4
    %v1412 = vrot.slane %v1407, 5
    %v1415 = vadd.f32 %v315, %v1411
    %v1416 = vadd.f32 %v320, %v1412
    %v1417 = vxor.u32 %v1415, 2147483648
    %v1418 = vxor.u32 %v1416, 2147483648
    %v1419 = vmul.f32 %v1417, 1.442695
    %v1420 = vpow.pop %v1419
    %v1421 = vmul.f32 %v1418, 1.442695
    %v1422 = vpow.pop %v1421
    %v1423 = vadd.f32 %v1420, 1.0
    %v1424 = vadd.f32 %v1422, 1.0
    %v1425 = vrcp.pop %v1423
    %v1426 = vmul.f32 1.0, %v1425
    %v1427 = vrcp.pop %v1424
    %v1428 = vmul.f32 1.0, %v1427
    %v1429 = vadd.f32 %v1407, %v429
    %v1431 = vrot.slane %v1429, 4
    %v1432 = vrot.slane %v1429, 5
    %1433 = vrot.lane.b32.xlu0 %v1431, 96
    %v1434 = vpop.permute.xlu0 %1433
    %1435 = vrot.lane.b32.xlu0 %v1432, 96
    %v1436 = vpop.permute.xlu0 %1435
    %v1439 = vmul.f32 %v1426, %v1434
    %v1440 = vmul.f32 %v1428, %v1436
    %1443 = vrot.lane.b32.xlu0 %v1439, 32
    %v1444 = vpop.permute.xlu0 %1443
    %1445 = vrot.lane.b32.xlu0 %v1440, 32
    %v1446 = vpop.permute.xlu0 %1445
    %v1449 = vadd.f32 %v315, %v1444
    %v1450 = vadd.f32 %v320, %v1446
    %v1451 = vtanh.pop %v1449
    %v1452 = vtanh.pop %v1450
    %v1453 = vsub.f32 1.0, %v1426
    %v1454 = vsub.f32 1.0, %v1428
    %1457 = vrot.lane.b32.xlu0 %v1451, 112
    %v1458 = vpop.permute.xlu0 %1457
    %1459 = vrot.lane.b32.xlu0 %v1452, 112
    %v1460 = vpop.permute.xlu0 %1459
    %v1463 = vmul.f32 %v1453, %v1458
    %v1464 = vmul.f32 %v1454, %v1460
    %v1465 = vrot.slane %v1220, 7
    %v1468 = vmul.f32 %v1426, %v1465
    %v1469 = vmul.f32 %v1428, %v1224
    %v1470 = vadd.f32 %v1463, %v1468
    %v1471 = vadd.f32 %v1464, %v1469
    %v1474 = vrot.slane %v1471, 7
    %vm1475 = vcmask 1045509
    %v1476 = vsel %vm1475, %v1474, %v1470
    %1477 = vrot.lane.b32.xlu0 %v1476, 112
    %v1478 = vpop.permute.xlu0 %1477
    %v1481 = vrot.slane %v1332, 4
    %v1483 = vsel %vm331, %v1478, %v1481
    %v1485 = vrot.slane %v1483, 4
    %v1486 = vsel %vm492, %v1485, 0
    %1488 = vmatprep.subr.mxu0 0.0
    %1489 = vmatpush1.msra.mxu0 %v326
    %1490 = vmatprep.subr.mxu0 0.0
    %1491 = vmatpush1.msra.mxu0 %v327
    %1492 = vmatprep.subr.mxu0 0.0
    %1493 = vmatpush1.msra.mxu0 %v328
    %1494 = vmatprep.subr.mxu0 0.0
    %1495 = vmatpush1.msra.mxu0 %v329
    %1496 = vmatprep.subr.mxu0 0.0
    %1497 = vmatpush1.msra.mxu0 0.0
    %1498 = vmatprep.subr.mxu0 0.0
    %1499 = vmatpush1.msra.mxu0 0.0
    %1500 = vmatprep.subr.mxu0 0.0
    %1501 = vmatpush1.msra.mxu0 0.0
    %1502 = vmatprep.subr.mxu0 0.0
    %1503 = vmatpush1.msra.mxu0 0.0
    %1504 = vmatprep.subr.mxu0 0.0
    %1505 = vmatpush1.msra.mxu0 0.0
    %1506 = vmatprep.subr.mxu0 0.0
    %1507 = vmatpush1.msra.mxu0 0.0
    %1508 = vmatprep.subr.mxu0 0.0
    %1509 = vmatpush1.msra.mxu0 0.0
    %1510 = vmatprep.subr.mxu0 0.0
    %1511 = vmatpush1.msra.mxu0 0.0
    %1512 = vmatprep.subr.mxu0 0.0
    %1513 = vmatpush1.msra.mxu0 0.0
    %1514 = vmatprep.subr.mxu0 0.0
    %1515 = vmatpush1.msra.mxu0 0.0
    %1516 = vmatprep.subr.mxu0 0.0
    %1517 = vmatpush1.msra.mxu0 0.0
    %1518 = vmatprep.subr.mxu0 0.0
    %1519 = vmatpush1.msra.mxu0 0.0
    %1520 = vmatprep.subr.mxu0 0.0
    %1521 = vmatpush1.msra.mxu0 0.0
    %1522 = vmatprep.subr.mxu0 0.0
    %1523 = vmatpush1.msra.mxu0 0.0
    %1524 = vmatprep.subr.mxu0 0.0
    %1525 = vmatpush1.msra.mxu0 0.0
    %1526 = vmatprep.subr.mxu0 0.0
    %1527 = vmatpush1.msra.mxu0 0.0
    %1528 = vmatprep.subr.mxu0 0.0
    %1529 = vmatpush1.msra.mxu0 0.0
    %1530 = vmatprep.subr.mxu0 0.0
    %1531 = vmatpush1.msra.mxu0 0.0
    %1532 = vmatprep.subr.mxu0 0.0
    %1533 = vmatpush1.msra.mxu0 0.0
    %1534 = vmatprep.subr.mxu0 0.0
    %1535 = vmatpush1.msra.mxu0 0.0
    %1536 = vmatprep.subr.mxu0 0.0
    %1537 = vmatpush1.msra.mxu0 0.0
    %1538 = vmatprep.subr.mxu0 0.0
    %1539 = vmatpush1.msra.mxu0 0.0
    %1540 = vmatprep.subr.mxu0 0.0
    %1541 = vmatpush1.msra.mxu0 0.0
    %1542 = vmatprep.subr.mxu0 0.0
    %1543 = vmatpush1.msra.mxu0 0.0
    %1544 = vmatprep.subr.mxu0 0.0
    %1545 = vmatpush1.msra.mxu0 0.0
    %1546 = vmatprep.subr.mxu0 0.0
    %1547 = vmatpush1.msra.mxu0 0.0
    %1548 = vmatprep.subr.mxu0 0.0
    %1549 = vmatpush1.msra.mxu0 0.0
    %1550 = vmatprep.subr.mxu0 0.0
    %1551 = vmatpush1.msra.mxu0 0.0
    %1552 = vmatprep.mubr.f32.mxu0 0.0
    %1553 = vmatmul.mubr.f32.gmra.mrb[0].mxu0 %v1486
    %v1554 = vpop.f32.mrb[0].mxu0
    %v1555 = vadd.f32 %v490, %v1554
    %v1556 = vpop.f32.mrb[0].mxu0
    %1557 = vdwg.mxu0
    %v1558 = vxor.u32 %v1555, 2147483648
    %v1559 = vmul.f32 %v1558, 1.442695
    %v1560 = vpow.pop %v1559
    %v1561 = vadd.f32 %v1560, 1.0
    %v1562 = vrcp.pop %v1561
    %v1563 = vmul.f32 1.0, %v1562
    %1565 = vrot.lane.b32.xlu0 %v1555, 80
    %v1566 = vpop.permute.xlu0 %1565
    %v1568 = vmul.f32 %v1563, %v1566
    %1570 = vrot.lane.b32.xlu0 %v1568, 32
    %v1571 = vpop.permute.xlu0 %1570
    %v1573 = vadd.f32 %v1555, %v1571
    %v1574 = vtanh.pop %v1573
    %v1575 = vsub.f32 1.0, %v1563
    %1577 = vrot.lane.b32.xlu0 %v1574, 112
    %v1578 = vpop.permute.xlu0 %1577
    %v1580 = vmul.f32 %v1575, %v1578
    %v1581 = vmul.f32 %v1563, %v1332
    %v1582 = vadd.f32 %v1580, %v1581
    %v1583 = vrot.slane %v1470, 4
    %v1584 = vrot.slane %v1471, 3
    %v1585 = vsel %vm480, %v1584, %v1583
    %1586 = vrot.lane.b32.xlu0 %v1585, 112
    %v1587 = vpop.permute.xlu0 %1586
    %v1588 = vsel %vm331, %v1587, 0
    %1590 = vmatprep.subr.mxu0 0.0
    %1591 = vmatpush1.msra.mxu0 %v323
    %1592 = vmatprep.subr.mxu0 0.0
    %1593 = vmatpush1.msra.mxu0 %v324
    %1594 = vmatprep.subr.mxu0 0.0
    %1595 = vmatpush1.msra.mxu0 0.0
    %1596 = vmatprep.subr.mxu0 0.0
    %1597 = vmatpush1.msra.mxu0 0.0
    %1598 = vmatprep.subr.mxu0 0.0
    %1599 = vmatpush1.msra.mxu0 0.0
    %1600 = vmatprep.subr.mxu0 0.0
    %1601 = vmatpush1.msra.mxu0 0.0
    %1602 = vmatprep.subr.mxu0 0.0
    %1603 = vmatpush1.msra.mxu0 0.0
    %1604 = vmatprep.subr.mxu0 0.0
    %1605 = vmatpush1.msra.mxu0 0.0
    %1606 = vmatprep.subr.mxu0 0.0
    %1607 = vmatpush1.msra.mxu0 0.0
    %1608 = vmatprep.subr.mxu0 0.0
    %1609 = vmatpush1.msra.mxu0 0.0
    %1610 = vmatprep.subr.mxu0 0.0
    %1611 = vmatpush1.msra.mxu0 0.0
    %1612 = vmatprep.subr.mxu0 0.0
    %1613 = vmatpush1.msra.mxu0 0.0
    %1614 = vmatprep.subr.mxu0 0.0
    %1615 = vmatpush1.msra.mxu0 0.0
    %1616 = vmatprep.subr.mxu0 0.0
    %1617 = vmatpush1.msra.mxu0 0.0
    %1618 = vmatprep.subr.mxu0 0.0
    %1619 = vmatpush1.msra.mxu0 0.0
    %1620 = vmatprep.subr.mxu0 0.0
    %1621 = vmatpush1.msra.mxu0 0.0
    %1622 = vmatprep.subr.mxu0 0.0
    %1623 = vmatpush1.msra.mxu0 0.0
    %1624 = vmatprep.subr.mxu0 0.0
    %1625 = vmatpush1.msra.mxu0 0.0
    %1626 = vmatprep.subr.mxu0 0.0
    %1627 = vmatpush1.msra.mxu0 0.0
    %1628 = vmatprep.subr.mxu0 0.0
    %1629 = vmatpush1.msra.mxu0 0.0
    %1630 = vmatprep.subr.mxu0 0.0
    %1631 = vmatpush1.msra.mxu0 0.0
    %1632 = vmatprep.subr.mxu0 0.0
    %1633 = vmatpush1.msra.mxu0 0.0
    %1634 = vmatprep.subr.mxu0 0.0
    %1635 = vmatpush1.msra.mxu0 0.0
    %1636 = vmatprep.subr.mxu0 0.0
    %1637 = vmatpush1.msra.mxu0 0.0
    %1638 = vmatprep.subr.mxu0 0.0
    %1639 = vmatpush1.msra.mxu0 0.0
    %1640 = vmatprep.subr.mxu0 0.0
    %1641 = vmatpush1.msra.mxu0 0.0
    %1642 = vmatprep.subr.mxu0 0.0
    %1643 = vmatpush1.msra.mxu0 0.0
    %1644 = vmatprep.subr.mxu0 0.0
    %1645 = vmatpush1.msra.mxu0 0.0
    %1646 = vmatprep.subr.mxu0 0.0
    %1647 = vmatpush1.msra.mxu0 0.0
    %1648 = vmatprep.subr.mxu0 0.0
    %1649 = vmatpush1.msra.mxu0 0.0
    %1650 = vmatprep.subr.mxu0 0.0
    %1651 = vmatpush1.msra.mxu0 0.0
    %1652 = vmatprep.subr.mxu0 0.0
    %1653 = vmatpush1.msra.mxu0 0.0
    %1654 = vmatprep.mubr.f32.mxu0 0.0
    %1655 = vmatmul.mubr.f32.gmra.mrb[0].mxu0 %v1588
    %v1656 = vpop.f32.mrb[0].mxu0
    %v1657 = vadd.f32 0.0, %v1656
    %v1658 = vpop.f32.mrb[0].mxu0
    %1659 = vdwg.mxu0
    %v1661 = vrot.slane %v1657, 3
    %v1662 = vrot.slane %v1657, 4
    %v1665 = vadd.f32 %v315, %v1661
    %v1666 = vadd.f32 %v320, %v1662
    %v1667 = vxor.u32 %v1665, 2147483648
    %v1668 = vxor.u32 %v1666, 2147483648
    %v1669 = vmul.f32 %v1667, 1.442695
    %v1670 = vpow.pop %v1669
    %v1671 = vmul.f32 %v1668, 1.442695
    %v1672 = vpow.pop %v1671
    %v1673 = vadd.f32 %v1670, 1.0
    %v1674 = vadd.f32 %v1672, 1.0
    %v1675 = vrcp.pop %v1673
    %v1676 = vmul.f32 1.0, %v1675
    %v1677 = vrcp.pop %v1674
    %v1678 = vmul.f32 1.0, %v1677
    %v1679 = vadd.f32 %v1657, %v429
    %v1681 = vrot.slane %v1679, 3
    %v1682 = vrot.slane %v1679, 4
    %1683 = vrot.lane.b32.xlu0 %v1681, 96
    %v1684 = vpop.permute.xlu0 %1683
    %1685 = vrot.lane.b32.xlu0 %v1682, 96
    %v1686 = vpop.permute.xlu0 %1685
    %v1689 = vmul.f32 %v1676, %v1684
    %v1690 = vmul.f32 %v1678, %v1686
    %1693 = vrot.lane.b32.xlu0 %v1689, 32
    %v1694 = vpop.permute.xlu0 %1693
    %1695 = vrot.lane.b32.xlu0 %v1690, 32
    %v1696 = vpop.permute.xlu0 %1695
    %v1699 = vadd.f32 %v315, %v1694
    %v1700 = vadd.f32 %v320, %v1696
    %v1701 = vtanh.pop %v1699
    %v1702 = vtanh.pop %v1700
    %v1703 = vsub.f32 1.0, %v1676
    %v1704 = vsub.f32 1.0, %v1678
    %1707 = vrot.lane.b32.xlu0 %v1701, 112
    %v1708 = vpop.permute.xlu0 %1707
    %1709 = vrot.lane.b32.xlu0 %v1702, 112
    %v1710 = vpop.permute.xlu0 %1709
    %v1713 = vmul.f32 %v1703, %v1708
    %v1714 = vmul.f32 %v1704, %v1710
    %v1715 = vrot.slane %v1470, 7
    %v1718 = vmul.f32 %v1676, %v1715
    %v1719 = vmul.f32 %v1678, %v1474
    %v1720 = vadd.f32 %v1713, %v1718
    %v1721 = vadd.f32 %v1714, %v1719
    %v1724 = vrot.slane %v1721, 7
    %vm1725 = vcmask 1046534
    %v1726 = vsel %vm1725, %v1724, %v1720
    %1727 = vrot.lane.b32.xlu0 %v1726, 112
    %v1728 = vpop.permute.xlu0 %1727
    %v1731 = vrot.slane %v1582, 3
    %v1733 = vsel %vm331, %v1728, %v1731
    %v1735 = vrot.slane %v1733, 5
    %v1736 = vsel %vm492, %v1735, 0
    %1738 = vmatprep.subr.mxu0 0.0
    %1739 = vmatpush1.msra.mxu0 %v326
    %1740 = vmatprep.subr.mxu0 0.0
    %1741 = vmatpush1.msra.mxu0 %v327
    %1742 = vmatprep.subr.mxu0 0.0
    %1743 = vmatpush1.msra.mxu0 %v328
    %1744 = vmatprep.subr.mxu0 0.0
    %1745 = vmatpush1.msra.mxu0 %v329
    %1746 = vmatprep.subr.mxu0 0.0
    %1747 = vmatpush1.msra.mxu0 0.0
    %1748 = vmatprep.subr.mxu0 0.0
    %1749 = vmatpush1.msra.mxu0 0.0
    %1750 = vmatprep.subr.mxu0 0.0
    %1751 = vmatpush1.msra.mxu0 0.0
    %1752 = vmatprep.subr.mxu0 0.0
    %1753 = vmatpush1.msra.mxu0 0.0
    %1754 = vmatprep.subr.mxu0 0.0
    %1755 = vmatpush1.msra.mxu0 0.0
    %1756 = vmatprep.subr.mxu0 0.0
    %1757 = vmatpush1.msra.mxu0 0.0
    %1758 = vmatprep.subr.mxu0 0.0
    %1759 = vmatpush1.msra.mxu0 0.0
    %1760 = vmatprep.subr.mxu0 0.0
    %1761 = vmatpush1.msra.mxu0 0.0
    %1762 = vmatprep.subr.mxu0 0.0
    %1763 = vmatpush1.msra.mxu0 0.0
    %1764 = vmatprep.subr.mxu0 0.0
    %1765 = vmatpush1.msra.mxu0 0.0
    %1766 = vmatprep.subr.mxu0 0.0
    %1767 = vmatpush1.msra.mxu0 0.0
    %1768 = vmatprep.subr.mxu0 0.0
    %1769 = vmatpush1.msra.mxu0 0.0
    %1770 = vmatprep.subr.mxu0 0.0
    %1771 = vmatpush1.msra.mxu0 0.0
    %1772 = vmatprep.subr.mxu0 0.0
    %1773 = vmatpush1.msra.mxu0 0.0
    %1774 = vmatprep.subr.mxu0 0.0
    %1775 = vmatpush1.msra.mxu0 0.0
    %1776 = vmatprep.subr.mxu0 0.0
    %1777 = vmatpush1.msra.mxu0 0.0
    %1778 = vmatprep.subr.mxu0 0.0
    %1779 = vmatpush1.msra.mxu0 0.0
    %1780 = vmatprep.subr.mxu0 0.0
    %1781 = vmatpush1.msra.mxu0 0.0
    %1782 = vmatprep.subr.mxu0 0.0
    %1783 = vmatpush1.msra.mxu0 0.0
    %1784 = vmatprep.subr.mxu0 0.0
    %1785 = vmatpush1.msra.mxu0 0.0
    %1786 = vmatprep.subr.mxu0 0.0
    %1787 = vmatpush1.msra.mxu0 0.0
    %1788 = vmatprep.subr.mxu0 0.0
    %1789 = vmatpush1.msra.mxu0 0.0
    %1790 = vmatprep.subr.mxu0 0.0
    %1791 = vmatpush1.msra.mxu0 0.0
    %1792 = vmatprep.subr.mxu0 0.0
    %1793 = vmatpush1.msra.mxu0 0.0
    %1794 = vmatprep.subr.mxu0 0.0
    %1795 = vmatpush1.msra.mxu0 0.0
    %1796 = vmatprep.subr.mxu0 0.0
    %1797 = vmatpush1.msra.mxu0 0.0
    %1798 = vmatprep.subr.mxu0 0.0
    %1799 = vmatpush1.msra.mxu0 0.0
    %1800 = vmatprep.subr.mxu0 0.0
    %1801 = vmatpush1.msra.mxu0 0.0
    %1802 = vmatprep.mubr.f32.mxu0 0.0
    %1803 = vmatmul.mubr.f32.gmra.mrb[0].mxu0 %v1736
    %v1804 = vpop.f32.mrb[0].mxu0
    %v1805 = vadd.f32 %v490, %v1804
    %v1806 = vpop.f32.mrb[0].mxu0
    %1807 = vdwg.mxu0
    %v1808 = vxor.u32 %v1805, 2147483648
    %v1809 = vmul.f32 %v1808, 1.442695
    %v1810 = vpow.pop %v1809
    %v1811 = vadd.f32 %v1810, 1.0
    %v1812 = vrcp.pop %v1811
    %v1813 = vmul.f32 1.0, %v1812
    %1815 = vrot.lane.b32.xlu0 %v1805, 80
    %v1816 = vpop.permute.xlu0 %1815
    %v1818 = vmul.f32 %v1813, %v1816
    %1820 = vrot.lane.b32.xlu0 %v1818, 32
    %v1821 = vpop.permute.xlu0 %1820
    %v1823 = vadd.f32 %v1805, %v1821
    %v1824 = vtanh.pop %v1823
    %v1825 = vsub.f32 1.0, %v1813
    %1827 = vrot.lane.b32.xlu0 %v1824, 112
    %v1828 = vpop.permute.xlu0 %1827
    %v1830 = vmul.f32 %v1825, %v1828
    %v1831 = vmul.f32 %v1813, %v1582
    %v1832 = vadd.f32 %v1830, %v1831
    %v1833 = vrot.slane %v1720, 5
    %v1834 = vrot.slane %v1721, 4
    %v1835 = vsel %vm480, %v1834, %v1833
    %1836 = vrot.lane.b32.xlu0 %v1835, 112
    %v1837 = vpop.permute.xlu0 %1836
    %v1838 = vsel %vm331, %v1837, 0
    %1840 = vmatprep.subr.mxu0 0.0
    %1841 = vmatpush1.msra.mxu0 %v323
    %1842 = vmatprep.subr.mxu0 0.0
    %1843 = vmatpush1.msra.mxu0 %v324
    %1844 = vmatprep.subr.mxu0 0.0
    %1845 = vmatpush1.msra.mxu0 0.0
    %1846 = vmatprep.subr.mxu0 0.0
    %1847 = vmatpush1.msra.mxu0 0.0
    %1848 = vmatprep.subr.mxu0 0.0
    %1849 = vmatpush1.msra.mxu0 0.0
    %1850 = vmatprep.subr.mxu0 0.0
    %1851 = vmatpush1.msra.mxu0 0.0
    %1852 = vmatprep.subr.mxu0 0.0
    %1853 = vmatpush1.msra.mxu0 0.0
    %1854 = vmatprep.subr.mxu0 0.0
    %1855 = vmatpush1.msra.mxu0 0.0
    %1856 = vmatprep.subr.mxu0 0.0
    %1857 = vmatpush1.msra.mxu0 0.0
    %1858 = vmatprep.subr.mxu0 0.0
    %1859 = vmatpush1.msra.mxu0 0.0
    %1860 = vmatprep.subr.mxu0 0.0
    %1861 = vmatpush1.msra.mxu0 0.0
    %1862 = vmatprep.subr.mxu0 0.0
    %1863 = vmatpush1.msra.mxu0 0.0
    %1864 = vmatprep.subr.mxu0 0.0
    %1865 = vmatpush1.msra.mxu0 0.0
    %1866 = vmatprep.subr.mxu0 0.0
    %1867 = vmatpush1.msra.mxu0 0.0
    %1868 = vmatprep.subr.mxu0 0.0
    %1869 = vmatpush1.msra.mxu0 0.0
    %1870 = vmatprep.subr.mxu0 0.0
    %1871 = vmatpush1.msra.mxu0 0.0
    %1872 = vmatprep.subr.mxu0 0.0
    %1873 = vmatpush1.msra.mxu0 0.0
    %1874 = vmatprep.subr.mxu0 0.0
    %1875 = vmatpush1.msra.mxu0 0.0
    %1876 = vmatprep.subr.mxu0 0.0
    %1877 = vmatpush1.msra.mxu0 0.0
    %1878 = vmatprep.subr.mxu0 0.0
    %1879 = vmatpush1.msra.mxu0 0.0
    %1880 = vmatprep.subr.mxu0 0.0
    %1881 = vmatpush1.msra.mxu0 0.0
    %1882 = vmatprep.subr.mxu0 0.0
    %1883 = vmatpush1.msra.mxu0 0.0
    %1884 = vmatprep.subr.mxu0 0.0
    %1885 = vmatpush1.msra.mxu0 0.0
    %1886 = vmatprep.subr.mxu0 0.0
    %1887 = vmatpush1.msra.mxu0 0.0
    %1888 = vmatprep.subr.mxu0 0.0
    %1889 = vmatpush1.msra.mxu0 0.0
    %1890 = vmatprep.subr.mxu0 0.0
    %1891 = vmatpush1.msra.mxu0 0.0
    %1892 = vmatprep.subr.mxu0 0.0
    %1893 = vmatpush1.msra.mxu0 0.0
    %1894 = vmatprep.subr.mxu0 0.0
    %1895 = vmatpush1.msra.mxu0 0.0
    %1896 = vmatprep.subr.mxu0 0.0
    %1897 = vmatpush1.msra.mxu0 0.0
    %1898 = vmatprep.subr.mxu0 0.0
    %1899 = vmatpush1.msra.mxu0 0.0
    %1900 = vmatprep.subr.mxu0 0.0
    %1901 = vmatpush1.msra.mxu0 0.0
    %1902 = vmatprep.subr.mxu0 0.0
    %1903 = vmatpush1.msra.mxu0 0.0
    %1904 = vmatprep.mubr.f32.mxu0 0.0
    %1905 = vmatmul.mubr.f32.gmra.mrb[0].mxu0 %v1838
    %v1906 = vpop.f32.mrb[0].mxu0
    %v1907 = vadd.f32 0.0, %v1906
    %v1908 = vpop.f32.mrb[0].mxu0
    %1909 = vdwg.mxu0
    %v1911 = vrot.slane %v1907, 2
    %v1912 = vrot.slane %v1907, 3
    %v1915 = vadd.f32 %v315, %v1911
    %v1916 = vadd.f32 %v320, %v1912
    %v1917 = vxor.u32 %v1915, 2147483648
    %v1918 = vxor.u32 %v1916, 2147483648
    %v1919 = vmul.f32 %v1917, 1.442695
    %v1920 = vpow.pop %v1919
    %v1921 = vmul.f32 %v1918, 1.442695
    %v1922 = vpow.pop %v1921
    %v1923 = vadd.f32 %v1920, 1.0
    %v1924 = vadd.f32 %v1922, 1.0
    %v1925 = vrcp.pop %v1923
    %v1926 = vmul.f32 1.0, %v1925
    %v1927 = vrcp.pop %v1924
    %v1928 = vmul.f32 1.0, %v1927
    %v1929 = vadd.f32 %v1907, %v429
    %v1931 = vrot.slane %v1929, 2
    %v1932 = vrot.slane %v1929, 3
    %1933 = vrot.lane.b32.xlu0 %v1931, 96
    %v1934 = vpop.permute.xlu0 %1933
    %1935 = vrot.lane.b32.xlu0 %v1932, 96
    %v1936 = vpop.permute.xlu0 %1935
    %v1939 = vmul.f32 %v1926, %v1934
    %v1940 = vmul.f32 %v1928, %v1936
    %1943 = vrot.lane.b32.xlu0 %v1939, 32
    %v1944 = vpop.permute.xlu0 %1943
    %1945 = vrot.lane.b32.xlu0 %v1940, 32
    %v1946 = vpop.permute.xlu0 %1945
    %v1949 = vadd.f32 %v315, %v1944
    %v1950 = vadd.f32 %v320, %v1946
    %v1951 = vtanh.pop %v1949
    %v1952 = vtanh.pop %v1950
    %v1953 = vsub.f32 1.0, %v1926
    %v1954 = vsub.f32 1.0, %v1928
    %1957 = vrot.lane.b32.xlu0 %v1951, 112
    %v1958 = vpop.permute.xlu0 %1957
    %1959 = vrot.lane.b32.xlu0 %v1952, 112
    %v1960 = vpop.permute.xlu0 %1959
    %v1963 = vmul.f32 %v1953, %v1958
    %v1964 = vmul.f32 %v1954, %v1960
    %v1965 = vrot.slane %v1720, 7
    %v1968 = vmul.f32 %v1926, %v1965
    %v1969 = vmul.f32 %v1928, %v1724
    %v1970 = vadd.f32 %v1963, %v1968
    %v1971 = vadd.f32 %v1964, %v1969
    %v1974 = vrot.slane %v1971, 7
    %vm1975 = vcmask 1047559
    %v1976 = vsel %vm1975, %v1974, %v1970
    %1977 = vrot.lane.b32.xlu0 %v1976, 112
    %v1978 = vpop.permute.xlu0 %1977
    %v1981 = vrot.slane %v1832, 2
    %v1983 = vsel %vm331, %v1978, %v1981
    %v1985 = vrot.slane %v1983, 6
    %v1986 = vsel %vm492, %v1985, 0
    %1988 = vmatprep.subr.mxu0 0.0
    %1989 = vmatpush1.msra.mxu0 %v326
    %1990 = vmatprep.subr.mxu0 0.0
    %1991 = vmatpush1.msra.mxu0 %v327
    %1992 = vmatprep.subr.mxu0 0.0
    %1993 = vmatpush1.msra.mxu0 %v328
    %1994 = vmatprep.subr.mxu0 0.0
    %1995 = vmatpush1.msra.mxu0 %v329
    %1996 = vmatprep.subr.mxu0 0.0
    %1997 = vmatpush1.msra.mxu0 0.0
    %1998 = vmatprep.subr.mxu0 0.0
    %1999 = vmatpush1.msra.mxu0 0.0
    %2000 = vmatprep.subr.mxu0 0.0
    %2001 = vmatpush1.msra.mxu0 0.0
    %2002 = vmatprep.subr.mxu0 0.0
    %2003 = vmatpush1.msra.mxu0 0.0
    %2004 = vmatprep.subr.mxu0 0.0
    %2005 = vmatpush1.msra.mxu0 0.0
    %2006 = vmatprep.subr.mxu0 0.0
    %2007 = vmatpush1.msra.mxu0 0.0
    %2008 = vmatprep.subr.mxu0 0.0
    %2009 = vmatpush1.msra.mxu0 0.0
    %2010 = vmatprep.subr.mxu0 0.0
    %2011 = vmatpush1.msra.mxu0 0.0
    %2012 = vmatprep.subr.mxu0 0.0
    %2013 = vmatpush1.msra.mxu0 0.0
    %2014 = vmatprep.subr.mxu0 0.0
    %2015 = vmatpush1.msra.mxu0 0.0
    %2016 = vmatprep.subr.mxu0 0.0
    %2017 = vmatpush1.msra.mxu0 0.0
    %2018 = vmatprep.subr.mxu0 0.0
    %2019 = vmatpush1.msra.mxu0 0.0
    %2020 = vmatprep.subr.mxu0 0.0
    %2021 = vmatpush1.msra.mxu0 0.0
    %2022 = vmatprep.subr.mxu0 0.0
    %2023 = vmatpush1.msra.mxu0 0.0
    %2024 = vmatprep.subr.mxu0 0.0
    %2025 = vmatpush1.msra.mxu0 0.0
    %2026 = vmatprep.subr.mxu0 0.0
    %2027 = vmatpush1.msra.mxu0 0.0
    %2028 = vmatprep.subr.mxu0 0.0
    %2029 = vmatpush1.msra.mxu0 0.0
    %2030 = vmatprep.subr.mxu0 0.0
    %2031 = vmatpush1.msra.mxu0 0.0
    %2032 = vmatprep.subr.mxu0 0.0
    %2033 = vmatpush1.msra.mxu0 0.0
    %2034 = vmatprep.subr.mxu0 0.0
    %2035 = vmatpush1.msra.mxu0 0.0
    %2036 = vmatprep.subr.mxu0 0.0
    %2037 = vmatpush1.msra.mxu0 0.0
    %2038 = vmatprep.subr.mxu0 0.0
    %2039 = vmatpush1.msra.mxu0 0.0
    %2040 = vmatprep.subr.mxu0 0.0
    %2041 = vmatpush1.msra.mxu0 0.0
    %2042 = vmatprep.subr.mxu0 0.0
    %2043 = vmatpush1.msra.mxu0 0.0
    %2044 = vmatprep.subr.mxu0 0.0
    %2045 = vmatpush1.msra.mxu0 0.0
    %2046 = vmatprep.subr.mxu0 0.0
    %2047 = vmatpush1.msra.mxu0 0.0
    %2048 = vmatprep.subr.mxu0 0.0
    %2049 = vmatpush1.msra.mxu0 0.0
    %2050 = vmatprep.subr.mxu0 0.0
    %2051 = vmatpush1.msra.mxu0 0.0
    %2052 = vmatprep.mubr.f32.mxu0 0.0
    %2053 = vmatmul.mubr.f32.gmra.mrb[0].mxu0 %v1986
    %v2054 = vpop.f32.mrb[0].mxu0
    %v2055 = vadd.f32 %v490, %v2054
    %v2056 = vpop.f32.mrb[0].mxu0
    %2057 = vdwg.mxu0
    %v2058 = vxor.u32 %v2055, 2147483648
    %v2059 = vmul.f32 %v2058, 1.442695
    %v2060 = vpow.pop %v2059
    %v2061 = vadd.f32 %v2060, 1.0
    %v2062 = vrcp.pop %v2061
    %v2063 = vmul.f32 1.0, %v2062
    %2065 = vrot.lane.b32.xlu0 %v2055, 80
    %v2066 = vpop.permute.xlu0 %2065
    %v2068 = vmul.f32 %v2063, %v2066
    %2070 = vrot.lane.b32.xlu0 %v2068, 32
    %v2071 = vpop.permute.xlu0 %2070
    %v2073 = vadd.f32 %v2055, %v2071
    %v2074 = vtanh.pop %v2073
    %v2075 = vsub.f32 1.0, %v2063
    %2077 = vrot.lane.b32.xlu0 %v2074, 112
    %v2078 = vpop.permute.xlu0 %2077
    %v2080 = vmul.f32 %v2075, %v2078
    %v2081 = vmul.f32 %v2063, %v1832
    %v2082 = vadd.f32 %v2080, %v2081
    %v2083 = vrot.slane %v1970, 6
    %v2084 = vrot.slane %v1971, 5
    %v2085 = vsel %vm480, %v2084, %v2083
    %2086 = vrot.lane.b32.xlu0 %v2085, 112
    %v2087 = vpop.permute.xlu0 %2086
    %v2088 = vsel %vm331, %v2087, 0
    %2090 = vmatprep.subr.mxu0 0.0
    %2091 = vmatpush1.msra.mxu0 %v323
    %2092 = vmatprep.subr.mxu0 0.0
    %2093 = vmatpush1.msra.mxu0 %v324
    %2094 = vmatprep.subr.mxu0 0.0
    %2095 = vmatpush1.msra.mxu0 0.0
    %2096 = vmatprep.subr.mxu0 0.0
    %2097 = vmatpush1.msra.mxu0 0.0
    %2098 = vmatprep.subr.mxu0 0.0
    %2099 = vmatpush1.msra.mxu0 0.0
    %2100 = vmatprep.subr.mxu0 0.0
    %2101 = vmatpush1.msra.mxu0 0.0
    %2102 = vmatprep.subr.mxu0 0.0
    %2103 = vmatpush1.msra.mxu0 0.0
    %2104 = vmatprep.subr.mxu0 0.0
    %2105 = vmatpush1.msra.mxu0 0.0
    %2106 = vmatprep.subr.mxu0 0.0
    %2107 = vmatpush1.msra.mxu0 0.0
    %2108 = vmatprep.subr.mxu0 0.0
    %2109 = vmatpush1.msra.mxu0 0.0
    %2110 = vmatprep.subr.mxu0 0.0
    %2111 = vmatpush1.msra.mxu0 0.0
    %2112 = vmatprep.subr.mxu0 0.0
    %2113 = vmatpush1.msra.mxu0 0.0
    %2114 = vmatprep.subr.mxu0 0.0
    %2115 = vmatpush1.msra.mxu0 0.0
    %2116 = vmatprep.subr.mxu0 0.0
    %2117 = vmatpush1.msra.mxu0 0.0
    %2118 = vmatprep.subr.mxu0 0.0
    %2119 = vmatpush1.msra.mxu0 0.0
    %2120 = vmatprep.subr.mxu0 0.0
    %2121 = vmatpush1.msra.mxu0 0.0
    %2122 = vmatprep.subr.mxu0 0.0
    %2123 = vmatpush1.msra.mxu0 0.0
    %2124 = vmatprep.subr.mxu0 0.0
    %2125 = vmatpush1.msra.mxu0 0.0
    %2126 = vmatprep.subr.mxu0 0.0
    %2127 = vmatpush1.msra.mxu0 0.0
    %2128 = vmatprep.subr.mxu0 0.0
    %2129 = vmatpush1.msra.mxu0 0.0
    %2130 = vmatprep.subr.mxu0 0.0
    %2131 = vmatpush1.msra.mxu0 0.0
    %2132 = vmatprep.subr.mxu0 0.0
    %2133 = vmatpush1.msra.mxu0 0.0
    %2134 = vmatprep.subr.mxu0 0.0
    %2135 = vmatpush1.msra.mxu0 0.0
    %2136 = vmatprep.subr.mxu0 0.0
    %2137 = vmatpush1.msra.mxu0 0.0
    %2138 = vmatprep.subr.mxu0 0.0
    %2139 = vmatpush1.msra.mxu0 0.0
    %2140 = vmatprep.subr.mxu0 0.0
    %2141 = vmatpush1.msra.mxu0 0.0
    %2142 = vmatprep.subr.mxu0 0.0
    %2143 = vmatpush1.msra.mxu0 0.0
    %2144 = vmatprep.subr.mxu0 0.0
    %2145 = vmatpush1.msra.mxu0 0.0
    %2146 = vmatprep.subr.mxu0 0.0
    %2147 = vmatpush1.msra.mxu0 0.0
    %2148 = vmatprep.subr.mxu0 0.0
    %2149 = vmatpush1.msra.mxu0 0.0
    %2150 = vmatprep.subr.mxu0 0.0
    %2151 = vmatpush1.msra.mxu0 0.0
    %2152 = vmatprep.subr.mxu0 0.0
    %2153 = vmatpush1.msra.mxu0 0.0
    %2154 = vmatprep.mubr.f32.mxu0 0.0
    %2155 = vmatmul.mubr.f32.gmra.mrb[0].mxu0 %v2088
    %v2156 = vpop.f32.mrb[0].mxu0
    %v2157 = vadd.f32 0.0, %v2156
    %v2158 = vpop.f32.mrb[0].mxu0
    %2159 = vdwg.mxu0
    %v2161 = vrot.slane %v2157, 1
    %v2162 = vrot.slane %v2157, 2
    %v2165 = vadd.f32 %v315, %v2161
    %v2166 = vadd.f32 %v320, %v2162
    %v2167 = vxor.u32 %v2165, 2147483648
    %v2168 = vxor.u32 %v2166, 2147483648
    %v2169 = vmul.f32 %v2167, 1.442695
    %v2170 = vpow.pop %v2169
    %v2171 = vmul.f32 %v2168, 1.442695
    %v2172 = vpow.pop %v2171
    %v2173 = vadd.f32 %v2170, 1.0
    %v2174 = vadd.f32 %v2172, 1.0
    %v2175 = vrcp.pop %v2173
    %v2176 = vmul.f32 1.0, %v2175
    %v2177 = vrcp.pop %v2174
    %v2178 = vmul.f32 1.0, %v2177
    %v2179 = vadd.f32 %v2157, %v429
    %v2181 = vrot.slane %v2179, 1
    %v2182 = vrot.slane %v2179, 2
    %2183 = vrot.lane.b32.xlu0 %v2181, 96
    %v2184 = vpop.permute.xlu0 %2183
    %2185 = vrot.lane.b32.xlu0 %v2182, 96
    %v2186 = vpop.permute.xlu0 %2185
    %v2189 = vmul.f32 %v2176, %v2184
    %v2190 = vmul.f32 %v2178, %v2186
    %2193 = vrot.lane.b32.xlu0 %v2189, 32
    %v2194 = vpop.permute.xlu0 %2193
    %2195 = vrot.lane.b32.xlu0 %v2190, 32
    %v2196 = vpop.permute.xlu0 %2195
    %v2199 = vadd.f32 %v315, %v2194
    %v2200 = vadd.f32 %v320, %v2196
    %v2201 = vtanh.pop %v2199
    %v2202 = vtanh.pop %v2200
    %v2203 = vsub.f32 1.0, %v2176
    %v2204 = vsub.f32 1.0, %v2178
    %2207 = vrot.lane.b32.xlu0 %v2201, 112
    %v2208 = vpop.permute.xlu0 %2207
    %2209 = vrot.lane.b32.xlu0 %v2202, 112
    %v2210 = vpop.permute.xlu0 %2209
    %v2213 = vmul.f32 %v2203, %v2208
    %v2214 = vmul.f32 %v2204, %v2210
    %v2215 = vrot.slane %v1970, 7
    %v2218 = vmul.f32 %v2176, %v2215
    %v2219 = vmul.f32 %v2178, %v1974
    %v2220 = vadd.f32 %v2213, %v2218
    %v2221 = vadd.f32 %v2214, %v2219
    %v2224 = vrot.slane %v2221, 7
    %2225 = vrot.lane.b32.xlu0 %v2220, 112
    %v2226 = vpop.permute.xlu0 %2225
    %2227 = vrot.lane.b32.xlu0 %v2224, 112
    %v2228 = vpop.permute.xlu0 %2227
    %v2232 = vrot.slane %v2082, 1
    %v2234 = vsel %vm331, %v2226, %v2232
    %v2235 = vsel %vm331, %v2228, %v2232
    %vm2238 = vcmask 1040384
    %v2239 = vrot.slane %v2234, 7
    %v2240 = vrot.slane %v2235, 7
    %v2241 = vsel %vm2238, %v2239, %v2240
    %v2242 = vsel %vm492, %v2241, 0
    %2244 = vmatprep.subr.mxu0 0.0
    %2245 = vmatpush1.msra.mxu0 %v326
    %2246 = vmatprep.subr.mxu0 0.0
    %2247 = vmatpush1.msra.mxu0 %v327
    %2248 = vmatprep.subr.mxu0 0.0
    %2249 = vmatpush1.msra.mxu0 %v328
    %2250 = vmatprep.subr.mxu0 0.0
    %2251 = vmatpush1.msra.mxu0 %v329
    %2252 = vmatprep.subr.mxu0 0.0
    %2253 = vmatpush1.msra.mxu0 0.0
    %2254 = vmatprep.subr.mxu0 0.0
    %2255 = vmatpush1.msra.mxu0 0.0
    %2256 = vmatprep.subr.mxu0 0.0
    %2257 = vmatpush1.msra.mxu0 0.0
    %2258 = vmatprep.subr.mxu0 0.0
    %2259 = vmatpush1.msra.mxu0 0.0
    %2260 = vmatprep.subr.mxu0 0.0
    %2261 = vmatpush1.msra.mxu0 0.0
    %2262 = vmatprep.subr.mxu0 0.0
    %2263 = vmatpush1.msra.mxu0 0.0
    %2264 = vmatprep.subr.mxu0 0.0
    %2265 = vmatpush1.msra.mxu0 0.0
    %2266 = vmatprep.subr.mxu0 0.0
    %2267 = vmatpush1.msra.mxu0 0.0
    %2268 = vmatprep.subr.mxu0 0.0
    %2269 = vmatpush1.msra.mxu0 0.0
    %2270 = vmatprep.subr.mxu0 0.0
    %2271 = vmatpush1.msra.mxu0 0.0
    %2272 = vmatprep.subr.mxu0 0.0
    %2273 = vmatpush1.msra.mxu0 0.0
    %2274 = vmatprep.subr.mxu0 0.0
    %2275 = vmatpush1.msra.mxu0 0.0
    %2276 = vmatprep.subr.mxu0 0.0
    %2277 = vmatpush1.msra.mxu0 0.0
    %2278 = vmatprep.subr.mxu0 0.0
    %2279 = vmatpush1.msra.mxu0 0.0
    %2280 = vmatprep.subr.mxu0 0.0
    %2281 = vmatpush1.msra.mxu0 0.0
    %2282 = vmatprep.subr.mxu0 0.0
    %2283 = vmatpush1.msra.mxu0 0.0
    %2284 = vmatprep.subr.mxu0 0.0
    %2285 = vmatpush1.msra.mxu0 0.0
    %2286 = vmatprep.subr.mxu0 0.0
    %2287 = vmatpush1.msra.mxu0 0.0
    %2288 = vmatprep.subr.mxu0 0.0
    %2289 = vmatpush1.msra.mxu0 0.0
    %2290 = vmatprep.subr.mxu0 0.0
    %2291 = vmatpush1.msra.mxu0 0.0
    %2292 = vmatprep.subr.mxu0 0.0
    %2293 = vmatpush1.msra.mxu0 0.0
    %2294 = vmatprep.subr.mxu0 0.0
    %2295 = vmatpush1.msra.mxu0 0.0
    %2296 = vmatprep.subr.mxu0 0.0
    %2297 = vmatpush1.msra.mxu0 0.0
    %2298 = vmatprep.subr.mxu0 0.0
    %2299 = vmatpush1.msra.mxu0 0.0
    %2300 = vmatprep.subr.mxu0 0.0
    %2301 = vmatpush1.msra.mxu0 0.0
    %2302 = vmatprep.subr.mxu0 0.0
    %2303 = vmatpush1.msra.mxu0 0.0
    %2304 = vmatprep.subr.mxu0 0.0
    %2305 = vmatpush1.msra.mxu0 0.0
    %2306 = vmatprep.subr.mxu0 0.0
    %2307 = vmatpush1.msra.mxu0 0.0
    %2308 = vmatprep.mubr.f32.mxu0 0.0
    %2309 = vmatmul.mubr.f32.gmra.mrb[0].mxu0 %v2242
    %v2310 = vpop.f32.mrb[0].mxu0
    %v2311 = vadd.f32 %v490, %v2310
    %v2312 = vpop.f32.mrb[0].mxu0
    %2313 = vdwg.mxu0
    %v2314 = vxor.u32 %v2311, 2147483648
    %v2315 = vmul.f32 %v2314, 1.442695
    %v2316 = vpow.pop %v2315
    %v2317 = vadd.f32 %v2316, 1.0
    %v2318 = vrcp.pop %v2317
    %v2319 = vmul.f32 1.0, %v2318
    %2321 = vrot.lane.b32.xlu0 %v2311, 80
    %v2322 = vpop.permute.xlu0 %2321
    %v2324 = vmul.f32 %v2319, %v2322
    %2326 = vrot.lane.b32.xlu0 %v2324, 32
    %v2327 = vpop.permute.xlu0 %2326
    %v2329 = vadd.f32 %v2311, %v2327
    %v2330 = vtanh.pop %v2329
    %v2331 = vsub.f32 1.0, %v2319
    %2333 = vrot.lane.b32.xlu0 %v2330, 112
    %v2334 = vpop.permute.xlu0 %2333
    %v2336 = vmul.f32 %v2331, %v2334
    %v2337 = vmul.f32 %v2319, %v2082
    %v2338 = vadd.f32 %v2336, %v2337
    %2340 = vrot.lane.b32.xlu0 %v2338, 112
    %v2341 = vpop.permute.xlu0 %2340
    %2343 = vrot.lane.b32.xlu0 %v48, 16
    %v2344 = vpop.permute.xlu0 %2343
    %v2346 = vsel %vm331, %v2341, %v2344
    %v2347 = vld [vmem:[%s12] sm:$0xff]
    %v2348 = vld [vmem:[%s12 + $0x8] sm:$0xff]
    %v2349 = vld [vmem:[%s12 + $0x10] sm:$0xff]
    %v2350 = vld [vmem:[%s12 + $0x18] sm:$0xf]
    %v2351 = vld [vmem:[%s13] sm:$0x1]
    %v2353 = vlaneseq
    %v2354 = vshrl.u32 %v2353, 7
    %v2355 = vsub.s32 0, %v2354
    %v2356 = vrot.slane %v2351, %v2355
    %vm2358 = vcmask 228352
    %v2360 = vsel %vm2358, %v2346, 0
    %v2363 = vsel %vm62, %v2350, 0
    %2365 = vmatprep.subr.mxu0 0.0
    %2366 = vmatpush1.msra.mxu0 %v2347
    %2367 = vmatprep.subr.mxu0 0.0
    %2368 = vmatpush1.msra.mxu0 %v2348
    %2369 = vmatprep.subr.mxu0 0.0
    %2370 = vmatpush1.msra.mxu0 %v2349
    %2371 = vmatprep.subr.mxu0 0.0
    %2372 = vmatpush1.msra.mxu0 %v2363
    %2373 = vmatprep.subr.mxu0 0.0
    %2374 = vmatpush1.msra.mxu0 0.0
    %2375 = vmatprep.subr.mxu0 0.0
    %2376 = vmatpush1.msra.mxu0 0.0
    %2377 = vmatprep.subr.mxu0 0.0
    %2378 = vmatpush1.msra.mxu0 0.0
    %2379 = vmatprep.subr.mxu0 0.0
    %2380 = vmatpush1.msra.mxu0 0.0
    %2381 = vmatprep.subr.mxu0 0.0
    %2382 = vmatpush1.msra.mxu0 0.0
    %2383 = vmatprep.subr.mxu0 0.0
    %2384 = vmatpush1.msra.mxu0 0.0
    %2385 = vmatprep.subr.mxu0 0.0
    %2386 = vmatpush1.msra.mxu0 0.0
    %2387 = vmatprep.subr.mxu0 0.0
    %2388 = vmatpush1.msra.mxu0 0.0
    %2389 = vmatprep.subr.mxu0 0.0
    %2390 = vmatpush1.msra.mxu0 0.0
    %2391 = vmatprep.subr.mxu0 0.0
    %2392 = vmatpush1.msra.mxu0 0.0
    %2393 = vmatprep.subr.mxu0 0.0
    %2394 = vmatpush1.msra.mxu0 0.0
    %2395 = vmatprep.subr.mxu0 0.0
    %2396 = vmatpush1.msra.mxu0 0.0
    %2397 = vmatprep.subr.mxu0 0.0
    %2398 = vmatpush1.msra.mxu0 0.0
    %2399 = vmatprep.subr.mxu0 0.0
    %2400 = vmatpush1.msra.mxu0 0.0
    %2401 = vmatprep.subr.mxu0 0.0
    %2402 = vmatpush1.msra.mxu0 0.0
    %2403 = vmatprep.subr.mxu0 0.0
    %2404 = vmatpush1.msra.mxu0 0.0
    %2405 = vmatprep.subr.mxu0 0.0
    %2406 = vmatpush1.msra.mxu0 0.0
    %2407 = vmatprep.subr.mxu0 0.0
    %2408 = vmatpush1.msra.mxu0 0.0
    %2409 = vmatprep.subr.mxu0 0.0
    %2410 = vmatpush1.msra.mxu0 0.0
    %2411 = vmatprep.subr.mxu0 0.0
    %2412 = vmatpush1.msra.mxu0 0.0
    %2413 = vmatprep.subr.mxu0 0.0
    %2414 = vmatpush1.msra.mxu0 0.0
    %2415 = vmatprep.subr.mxu0 0.0
    %2416 = vmatpush1.msra.mxu0 0.0
    %2417 = vmatprep.subr.mxu0 0.0
    %2418 = vmatpush1.msra.mxu0 0.0
    %2419 = vmatprep.subr.mxu0 0.0
    %2420 = vmatpush1.msra.mxu0 0.0
    %2421 = vmatprep.subr.mxu0 0.0
    %2422 = vmatpush1.msra.mxu0 0.0
    %2423 = vmatprep.subr.mxu0 0.0
    %2424 = vmatpush1.msra.mxu0 0.0
    %2425 = vmatprep.subr.mxu0 0.0
    %2426 = vmatpush1.msra.mxu0 0.0
    %2427 = vmatprep.subr.mxu0 0.0
    %2428 = vmatpush1.msra.mxu0 0.0
    %2429 = vmatprep.mubr.f32.mxu0 0.0
    %2430 = vmatmul.mubr.f32.gmra.mrb[0].mxu0 %v2360
    %v2431 = vpop.f32.mrb[0].mxu0
    %v2432 = vadd.f32 %v2356, %v2431
    %v2433 = vpop.f32.mrb[0].mxu0
    %2434 = vdwg.mxu0
    %vm2435 = vcmask 58368
    %2436 = vst.msk [vmem:[#allocation2] sm:$0x3] %vm2435, %v2432
    // Predicated region
    $region58: #{tpu_custom_call.1} parent=1 // pred_check
      _
    $region59: #{tpu_custom_call.1} parent=1 // pred_check_branch
      %2438 = sbr.rel (0) target = $region61
    $region60: #{tpu_custom_call.1} parent=1 // pred_region
      %s2440 = ssub.s32 32, 32
      %2441 = vsyncadd [#allocation3], %s2440
      %s2443 = sshll.u32 [#allocation2], 4
      %s2444 = int_to_ptr.vmem [resolvable:$true] %s2443
      %2446 = dma.vmem_to_hbm [thread:$0]  %s2444, 32, %s14, [#allocation3]
    $region61: #{tpu_custom_call.1} parent=1 // pred_fallthru
      _
    // Predicated region
    $region62: #{tpu_custom_call.1} parent=1 // pred_check
      _
    $region63: #{tpu_custom_call.1} parent=1 // pred_check_branch
      %2448 = sbr.rel (0) target = $region65
    $region64: #{tpu_custom_call.1} parent=1 // pred_region
      %2449 = dma.done [#allocation3], 32
    $region65: #{tpu_custom_call.1} parent=1 // pred_fallthru
      _
    %2450 = vsyncpa [#allocation3], 1

</llo_original>
